<compile_context>
chip_gen: v5e
topology: v5e:2x2
jax: 0.10.0
libtpu: 0.0.40
codegen_flags: <defaults>
</compile_context>

<pallas_src>
import jax
import jax.numpy as jnp
from jax.experimental import pallas as pl
from jax.experimental.pallas import tpu as pltpu


# ---------------------------------------------------------------------------
# Shared helpers
# ---------------------------------------------------------------------------
def _dropout_masks(key, shape, rate):
    """{0, 1/(1-rate)} masks, scale folded in (training=True semantics)."""
    keep = jax.random.uniform(key, shape) >= rate
    return keep.astype(jnp.float32) * (1.0 / (1.0 - rate))


def _clamp_vmem(nbytes):
    # Keep the scoped limit well under v7x's 64 MiB physical VMEM (headroom
    # for semaphores / compiler internal scratch), never below the default.
    return int(min(max(nbytes, 32 << 20), 48 << 20))


# ---------------------------------------------------------------------------
# FUSED path: all three propagation layers + final average in one pallas_call
# ---------------------------------------------------------------------------
def _fused_lightgcn_kernel(a_ref, x0_ref, mask_ref, out_ref, x_sc):
    layer = pl.program_id(0)

    @pl.when(layer == 0)
    def _init():
        x_sc[...] = x0_ref[...]
        out_ref[...] = x0_ref[...]           # accumulates x + x1 + x2 + x3

    # Dropout (mask already carries 1/(1-rate)) + bf16 cast: once per layer.
    xm = (x_sc[...] * mask_ref[0]).astype(jnp.bfloat16)
    y = jnp.dot(a_ref[...], xm, preferred_element_type=jnp.float32)
    x_sc[...] = y
    out_ref[...] += y

    @pl.when(layer == pl.num_programs(0) - 1)
    def _finalize():
        out_ref[...] *= 0.25


def _resident_spec(block_shape, buffered):
    """Constant-index (VMEM-resident) BlockSpec; single-buffered if requested."""
    ndim = len(block_shape)
    index_map = lambda l, _n=ndim: (0,) * _n
    if buffered:
        # The block never changes across grid steps -> double buffer is waste.
        return pl.BlockSpec(block_shape, index_map, pipeline_mode=pl.Buffered(1))
    return pl.BlockSpec(block_shape, index_map)


def _fused_forward(a_bf16, x0, masks, *, vmem_limit, buffered):
    n, e = x0.shape
    n_layers = masks.shape[0]
    return pl.pallas_call(
        _fused_lightgcn_kernel,
        out_shape=jax.ShapeDtypeStruct((n, e), jnp.float32),
        grid=(n_layers,),
        in_specs=[
            _resident_spec((n, n), buffered),              # A_hat (bf16), resident
            _resident_spec((n, e), buffered),              # x0 (f32), resident
            pl.BlockSpec((1, n, e), lambda l: (l, 0, 0)),  # per-layer dropout mask
        ],
        out_specs=pl.BlockSpec((n, e), lambda l: (0, 0)),  # resident accumulator
        scratch_shapes=[pltpu.VMEM((n, e), jnp.float32)],  # running layer activation
        compiler_params=pltpu.CompilerParams(
            dimension_semantics=("arbitrary",),            # layers are sequential
            vmem_limit_bytes=vmem_limit,
        ),
    )(a_bf16, x0, masks)


# ---------------------------------------------------------------------------
# STREAMED path: per-layer pallas_call, grid = (row blocks, K blocks)
# ---------------------------------------------------------------------------
def _propagate_kernel(a_ref, xm_ref, out_ref, acc_ref):
    k = pl.program_id(1)

    @pl.when(k == 0)
    def _init():
        acc_ref[...] = jnp.zeros_like(acc_ref)

    acc_ref[...] += jnp.dot(a_ref[...], xm_ref[...],
                            preferred_element_type=jnp.float32)

    @pl.when(k == pl.num_programs(1) - 1)
    def _finalize():
        out_ref[...] = acc_ref[...]


def _propagate_avg_kernel(a_ref, xm_ref, x0_ref, x1_ref, x2_ref, out_ref, acc_ref):
    k = pl.program_id(1)

    @pl.when(k == 0)
    def _init():
        acc_ref[...] = jnp.zeros_like(acc_ref)

    acc_ref[...] += jnp.dot(a_ref[...], xm_ref[...],
                            preferred_element_type=jnp.float32)

    @pl.when(k == pl.num_programs(1) - 1)
    def _finalize():
        # Fused final average: single lane-dense (TM, E) f32 store.
        out_ref[...] = (x0_ref[...] + x1_ref[...] + x2_ref[...] + acc_ref[...]) * 0.25


def _streamed_forward(a_bf16, x0, masks, *, tile):
    n, e = x0.shape
    tm = tk = tile

    # Pad N up to a multiple of the tile (zero rows/cols do not change the
    # valid outputs). No degenerate "whole matrix in one block" fallback.
    n_pad = ((n + tile - 1) // tile) * tile
    if n_pad != n:
        pad = n_pad - n
        a_bf16 = jnp.pad(a_bf16, ((0, pad), (0, pad)))
        x0 = jnp.pad(x0, ((0, pad), (0, 0)))
        masks = jnp.pad(masks, ((0, 0), (0, pad), (0, 0)))

    grid = (n_pad // tm, n_pad // tk)

    vmem_needed = (2 * tm * tk * 2      # double-buffered bf16 A tile
                   + 2 * tk * e * 2     # double-buffered bf16 rhs tile
                   + tm * e * 4         # f32 accumulator scratch
                   + 2 * tm * e * 4     # output tile
                   + 6 * tm * e * 4     # x0/x1/x2 row tiles (final layer)
                   + (4 << 20))         # compiler internal scratch headroom
    cp = pltpu.CompilerParams(
        dimension_semantics=("parallel", "arbitrary"),
        vmem_limit_bytes=_clamp_vmem(vmem_needed),
    )

    a_spec = pl.BlockSpec((tm, tk), lambda i, k: (i, k))
    xm_spec = pl.BlockSpec((tk, e), lambda i, k: (k, 0))
    row_spec = pl.BlockSpec((tm, e), lambda i, k: (i, 0))

    propagate = pl.pallas_call(
        _propagate_kernel,
        out_shape=jax.ShapeDtypeStruct((n_pad, e), jnp.float32),
        grid=grid,
        in_specs=[a_spec, xm_spec],
        out_specs=row_spec,
        scratch_shapes=[pltpu.VMEM((tm, e), jnp.float32)],
        compiler_params=cp,
    )

    # Dropout pre-applied in the wrapper: ONE fused XLA multiply + bf16 cast,
    # so the kernel RHS is the 2-byte/elt masked activation.
    x1 = propagate(a_bf16, (x0 * masks[0]).astype(jnp.bfloat16))
    x2 = propagate(a_bf16, (x1 * masks[1]).astype(jnp.bfloat16))

    final = pl.pallas_call(
        _propagate_avg_kernel,
        out_shape=jax.ShapeDtypeStruct((n_pad, e), jnp.float32),
        grid=grid,
        in_specs=[a_spec, xm_spec, row_spec, row_spec, row_spec],
        out_specs=row_spec,
        scratch_shapes=[pltpu.VMEM((tm, e), jnp.float32)],
        compiler_params=cp,
    )
    out = final(a_bf16, (x2 * masks[2]).astype(jnp.bfloat16), x0, x1, x2)
    return out[:n]


# ---------------------------------------------------------------------------
# Forward wrapper
# ---------------------------------------------------------------------------
def lightgcn_forward(embed, idx, a_hat, *, dropout_rate=0.1, key=None,
                     force_streamed=False, tile=512):
    # Embedding lookup (gather) + mask RNG are plain-JAX glue; the hot path
    # (the three A_hat matmuls + averaging) runs inside Pallas kernels.
    x0 = jnp.take(embed, idx, axis=0).astype(jnp.float32)     # [N, E]
    n, e = x0.shape

    if key is None:
        key = jax.random.PRNGKey(0)
    masks = _dropout_masks(key, (3, n, e), dropout_rate)       # [3, N, E]

    a_bf16 = a_hat.astype(jnp.bfloat16)                        # stream/hold A in bf16

    # Fused-path VMEM estimate (includes the in-kernel bf16 xm temporary).
    fused_bytes = (n * n * 2            # A_hat bf16, Buffered(1)
                   + n * e * 4          # x0 f32, Buffered(1)
                   + 2 * n * e * 4      # mask block f32, double buffered
                   + n * e * 4          # resident output accumulator
                   + n * e * 4          # x scratch
                   + n * e * 2)         # bf16 xm temporary
    use_fused = (not force_streamed) and fused_bytes <= (40 << 20)

    if use_fused:
        vmem_limit = _clamp_vmem(fused_bytes + (8 << 20))
        try:
            return _fused_forward(a_bf16, x0, masks,
                                  vmem_limit=vmem_limit, buffered=True)
        except Exception:
            # Fallback if this Pallas version rejects pipeline_mode=Buffered(1).
            return _fused_forward(a_bf16, x0, masks,
                                  vmem_limit=vmem_limit, buffered=False)

    return _streamed_forward(a_bf16, x0, masks, tile=tile)


def _xavier_uniform(key, shape):
    # torch.nn.init.xavier_uniform_ on a 2D tensor: fan_out = dim0, fan_in = dim1
    fan_out, fan_in = shape
    bound = (6.0 / (fan_in + fan_out)) ** 0.5
    return jax.random.uniform(key, shape, jnp.float32, -bound, bound)


def _reference(a_bf16, x0, masks):
    """Plain-JAX mixed-precision reference with the exact same casts."""
    x = x0
    acc = x0
    for l in range(masks.shape[0]):
        xm = (x * masks[l]).astype(jnp.bfloat16)
        x = jnp.dot(a_bf16, xm, preferred_element_type=jnp.float32)
        acc = acc + x
    return acc / 4.0


if __name__ == "__main__":
    in_ch, emb_ch, n_nodes = 64, 128, 256
    dropout_rate = 0.1

    key = jax.random.PRNGKey(0)
    k_emb, k_idx, k_adj, k_drop = jax.random.split(key, 4)

    embed = _xavier_uniform(k_emb, (in_ch, emb_ch))            # nn.Embedding weight

    # Node ids (embedding indices) and a symmetric-normalized adjacency matrix.
    idx = jax.random.randint(k_idx, (n_nodes,), 0, in_ch)
    raw = (jax.random.uniform(k_adj, (n_nodes, n_nodes)) > 0.9).astype(jnp.float32)
    adj = jnp.clip(raw + raw.T, 0.0, 1.0) + jnp.eye(n_nodes, dtype=jnp.float32)
    d_inv_sqrt = 1.0 / jnp.sqrt(jnp.sum(adj, axis=1))
    a_hat = adj * d_inv_sqrt[:, None] * d_inv_sqrt[None, :]

    # Fused path (A_hat VMEM-resident, single pallas_call).
    out = lightgcn_forward(embed, idx, a_hat, dropout_rate=dropout_rate, key=k_drop)
    out = jax.block_until_ready(out)
    assert out.shape == (n_nodes, emb_ch), out.shape
    assert bool(jnp.all(jnp.isfinite(out)))

    # Streamed (row x K tiled, accumulator + pl.when) path, forced at toy size.
    out_s = lightgcn_forward(embed, idx, a_hat, dropout_rate=dropout_rate,
                             key=k_drop, force_streamed=True, tile=128)
    out_s = jax.block_until_ready(out_s)
    assert out_s.shape == (n_nodes, emb_ch), out_s.shape

    # Both paths must match a plain-JAX mixed-precision reference that uses
    # the same dropout masks and the same bf16-input / f32-accumulate matmuls.
    x0 = jnp.take(embed, idx, axis=0).astype(jnp.float32)
    masks = _dropout_masks(k_drop, (3, n_nodes, emb_ch), dropout_rate)
    ref = _reference(a_hat.astype(jnp.bfloat16), x0, masks)

    err_f = float(jnp.max(jnp.abs(out - ref)))
    err_s = float(jnp.max(jnp.abs(out_s - ref)))
    assert err_f < 2e-3, ("fused mismatch", err_f)
    assert err_s < 2e-3, ("streamed mismatch", err_s)

    print("KERNEL_OK")
</pallas_src>

<mosaic_0001>
module attributes {stable_mosaic.version = 11 : i64} {
  func.func @_fused_lightgcn_kernel(%arg0: i32, %arg1: memref<256x256xbf16, #tpu.memory_space<vmem>>, %arg2: memref<256x128xf32, #tpu.memory_space<vmem>>, %arg3: memref<1x256x128xf32, #tpu.memory_space<vmem>>, %arg4: memref<256x128xf32, #tpu.memory_space<vmem>>, %arg5: memref<256x128xf32, #tpu.memory_space<vmem>>) attributes {dimension_semantics = [#tpu.dimension_semantics<arbitrary>], iteration_bounds = array<i64: 3>, scalar_prefetch = 0 : i64, scratch_operands = 1 : i64, tpu.core_type = #tpu.core_type<tc>, window_params = [{pipeline_mode = #tpu.pipeline_mode<synchronous>, transform_indices = @transform_0, window_bounds = array<i64: 256, 256>}, {pipeline_mode = #tpu.pipeline_mode<synchronous>, transform_indices = @transform_1, window_bounds = array<i64: 256, 128>}, {transform_indices = @transform_2, window_bounds = array<i64: 1, 256, 128>}, {pipeline_mode = #tpu.pipeline_mode<synchronous>, transform_indices = @transform_3, window_bounds = array<i64: 256, 128>}]} {
    %c0_i32 = arith.constant 0 : i32
    %0 = arith.cmpi eq, %arg0, %c0_i32 : i32
    %1 = arith.extui %0 : i1 to i32
    %c0_i32_0 = arith.constant 0 : i32
    %2 = arith.cmpi ne, %1, %c0_i32_0 : i32
    scf.if %2 {
      %c0_14 = arith.constant 0 : index
      %c0_15 = arith.constant 0 : index
      %17 = vector.load %arg2[%c0_14, %c0_15] : memref<256x128xf32, #tpu.memory_space<vmem>>, vector<256x128xf32>
      %c0_16 = arith.constant 0 : index
      %c0_17 = arith.constant 0 : index
      %18 = vector.load %arg5[%c0_16, %c0_17] : memref<256x128xf32, #tpu.memory_space<vmem>>, vector<256x128xf32>
      tpu.vector_store %arg5[%c0_16, %c0_17], %17 {strides = array<i32>} : memref<256x128xf32, #tpu.memory_space<vmem>>, vector<256x128xf32>,
      %c0_18 = arith.constant 0 : index
      %c0_19 = arith.constant 0 : index
      %19 = vector.load %arg2[%c0_18, %c0_19] : memref<256x128xf32, #tpu.memory_space<vmem>>, vector<256x128xf32>
      %c0_20 = arith.constant 0 : index
      %c0_21 = arith.constant 0 : index
      %20 = vector.load %arg4[%c0_20, %c0_21] : memref<256x128xf32, #tpu.memory_space<vmem>>, vector<256x128xf32>
      tpu.vector_store %arg4[%c0_20, %c0_21], %19 {strides = array<i32>} : memref<256x128xf32, #tpu.memory_space<vmem>>, vector<256x128xf32>,
    } else {
    }
    %c0 = arith.constant 0 : index
    %c0_1 = arith.constant 0 : index
    %3 = vector.load %arg5[%c0, %c0_1] : memref<256x128xf32, #tpu.memory_space<vmem>>, vector<256x128xf32>
    %c0_2 = arith.constant 0 : index
    %c0_3 = arith.constant 0 : index
    %c0_4 = arith.constant 0 : index
    %4 = vector.load %arg3[%c0_2, %c0_3, %c0_4] : memref<1x256x128xf32, #tpu.memory_space<vmem>>, vector<1x256x128xf32>
    %5 = vector.shape_cast %4 : vector<1x256x128xf32> to vector<256x128xf32>
    %6 = arith.mulf %3, %5 : vector<256x128xf32>
    %7 = arith.truncf %6 : vector<256x128xf32> to vector<256x128xbf16>
    %c0_5 = arith.constant 0 : index
    %c0_6 = arith.constant 0 : index
    %8 = vector.load %arg1[%c0_5, %c0_6] : memref<256x256xbf16, #tpu.memory_space<vmem>>, vector<256x256xbf16>
    %cst = arith.constant dense<0.000000e+00> : vector<256x128xf32>
    %9 = tpu.matmul %8, %7, %cst {dimension_numbers = #tpu.dot_dimension_numbers<[1], [0], [0], [1], [0, 0, 1, 1], [], []>} : vector<256x256xbf16>, vector<256x128xbf16>, vector<256x128xf32> -> vector<256x128xf32>
    %c0_7 = arith.constant 0 : index
    %c0_8 = arith.constant 0 : index
    %10 = vector.load %arg5[%c0_7, %c0_8] : memref<256x128xf32, #tpu.memory_space<vmem>>, vector<256x128xf32>
    tpu.vector_store %arg5[%c0_7, %c0_8], %9 {strides = array<i32>} : memref<256x128xf32, #tpu.memory_space<vmem>>, vector<256x128xf32>,
    %c0_9 = arith.constant 0 : index
    %c0_10 = arith.constant 0 : index
    %11 = vector.load %arg4[%c0_9, %c0_10] : memref<256x128xf32, #tpu.memory_space<vmem>>, vector<256x128xf32>
    %12 = arith.addf %11, %9 : vector<256x128xf32>
    %c0_11 = arith.constant 0 : index
    %c0_12 = arith.constant 0 : index
    %13 = vector.load %arg4[%c0_11, %c0_12] : memref<256x128xf32, #tpu.memory_space<vmem>>, vector<256x128xf32>
    tpu.vector_store %arg4[%c0_11, %c0_12], %12 {strides = array<i32>} : memref<256x128xf32, #tpu.memory_space<vmem>>, vector<256x128xf32>,
    %c2_i32 = arith.constant 2 : i32
    %14 = arith.cmpi eq, %arg0, %c2_i32 : i32
    %15 = arith.extui %14 : i1 to i32
    %c0_i32_13 = arith.constant 0 : i32
    %16 = arith.cmpi ne, %15, %c0_i32_13 : i32
    scf.if %16 {
      %c0_14 = arith.constant 0 : index
      %c0_15 = arith.constant 0 : index
      %17 = vector.load %arg4[%c0_14, %c0_15] : memref<256x128xf32, #tpu.memory_space<vmem>>, vector<256x128xf32>
      %cst_16 = arith.constant 2.500000e-01 : f32
      %18 = vector.broadcast %cst_16 : f32 to vector<256x128xf32>
      %19 = arith.mulf %17, %18 : vector<256x128xf32>
      %c0_17 = arith.constant 0 : index
      %c0_18 = arith.constant 0 : index
      %20 = vector.load %arg4[%c0_17, %c0_18] : memref<256x128xf32, #tpu.memory_space<vmem>>, vector<256x128xf32>
      tpu.vector_store %arg4[%c0_17, %c0_18], %19 {strides = array<i32>} : memref<256x128xf32, #tpu.memory_space<vmem>>, vector<256x128xf32>,
    } else {
    }
    return
  }
  func.func @transform_0(%arg0: i32) -> (i32, i32) {
    %c0_i32 = arith.constant 0 : i32
    %c0_i32_0 = arith.constant 0 : i32
    %c0_i32_1 = arith.constant 0 : i32
    return %c0_i32, %c0_i32_0 : i32, i32
  }
  func.func @transform_1(%arg0: i32) -> (i32, i32) {
    %c0_i32 = arith.constant 0 : i32
    %c0_i32_0 = arith.constant 0 : i32
    %c0_i32_1 = arith.constant 0 : i32
    return %c0_i32, %c0_i32_0 : i32, i32
  }
  func.func @transform_2(%arg0: i32) -> (i32, i32, i32) {
    %c0_i32 = arith.constant 0 : i32
    %c0_i32_0 = arith.constant 0 : i32
    %c0_i32_1 = arith.constant 0 : i32
    return %arg0, %c0_i32, %c0_i32_0 : i32, i32, i32
  }
  func.func @transform_3(%arg0: i32) -> (i32, i32) {
    %c0_i32 = arith.constant 0 : i32
    %c0_i32_0 = arith.constant 0 : i32
    %c0_i32_1 = arith.constant 0 : i32
    return %c0_i32, %c0_i32_0 : i32, i32
  }
}

module attributes {stable_mosaic.version = 11 : i64} {
  func.func @_fused_lightgcn_kernel(%arg0: i32, %arg1: memref<256x256xbf16, #tpu.memory_space<vmem>>, %arg2: memref<256x128xf32, #tpu.memory_space<vmem>>, %arg3: memref<1x256x128xf32, #tpu.memory_space<vmem>>, %arg4: memref<256x128xf32, #tpu.memory_space<vmem>>, %arg5: memref<256x128xf32, #tpu.memory_space<vmem>>) attributes {dimension_semantics = [#tpu.dimension_semantics<arbitrary>], iteration_bounds = array<i64: 3>, scalar_prefetch = 0 : i64, scratch_operands = 1 : i64, tpu.core_type = #tpu.core_type<tc>, window_params = [{pipeline_mode = #tpu.pipeline_mode<synchronous>, transform_indices = @transform_0, window_bounds = array<i64: 256, 256>}, {pipeline_mode = #tpu.pipeline_mode<synchronous>, transform_indices = @transform_1, window_bounds = array<i64: 256, 128>}, {transform_indices = @transform_2, window_bounds = array<i64: 1, 256, 128>}, {pipeline_mode = #tpu.pipeline_mode<synchronous>, transform_indices = @transform_3, window_bounds = array<i64: 256, 128>}]} {
    %c0_i32 = arith.constant 0 : i32
    %0 = arith.cmpi eq, %arg0, %c0_i32 : i32
    %1 = arith.extui %0 : i1 to i32
    %c0_i32_0 = arith.constant 0 : i32
    %2 = arith.cmpi ne, %1, %c0_i32_0 : i32
    scf.if %2 {
      %c0_14 = arith.constant 0 : index
      %c0_15 = arith.constant 0 : index
      %17 = vector.load %arg2[%c0_14, %c0_15] : memref<256x128xf32, #tpu.memory_space<vmem>>, vector<256x128xf32>
      %c0_16 = arith.constant 0 : index
      %c0_17 = arith.constant 0 : index
      %18 = vector.load %arg5[%c0_16, %c0_17] : memref<256x128xf32, #tpu.memory_space<vmem>>, vector<256x128xf32>
      tpu.vector_store %arg5[%c0_16, %c0_17], %17 {strides = array<i32>} : memref<256x128xf32, #tpu.memory_space<vmem>>, vector<256x128xf32>,
      %c0_18 = arith.constant 0 : index
      %c0_19 = arith.constant 0 : index
      %19 = vector.load %arg2[%c0_18, %c0_19] : memref<256x128xf32, #tpu.memory_space<vmem>>, vector<256x128xf32>
      %c0_20 = arith.constant 0 : index
      %c0_21 = arith.constant 0 : index
      %20 = vector.load %arg4[%c0_20, %c0_21] : memref<256x128xf32, #tpu.memory_space<vmem>>, vector<256x128xf32>
      tpu.vector_store %arg4[%c0_20, %c0_21], %19 {strides = array<i32>} : memref<256x128xf32, #tpu.memory_space<vmem>>, vector<256x128xf32>,
    } else {
    }
    %c0 = arith.constant 0 : index
    %c0_1 = arith.constant 0 : index
    %3 = vector.load %arg5[%c0, %c0_1] : memref<256x128xf32, #tpu.memory_space<vmem>>, vector<256x128xf32>
    %c0_2 = arith.constant 0 : index
    %c0_3 = arith.constant 0 : index
    %c0_4 = arith.constant 0 : index
    %4 = vector.load %arg3[%c0_2, %c0_3, %c0_4] : memref<1x256x128xf32, #tpu.memory_space<vmem>>, vector<1x256x128xf32>
    %5 = vector.shape_cast %4 : vector<1x256x128xf32> to vector<256x128xf32>
    %6 = arith.mulf %3, %5 : vector<256x128xf32>
    %7 = arith.truncf %6 : vector<256x128xf32> to vector<256x128xbf16>
    %c0_5 = arith.constant 0 : index
    %c0_6 = arith.constant 0 : index
    %8 = vector.load %arg1[%c0_5, %c0_6] : memref<256x256xbf16, #tpu.memory_space<vmem>>, vector<256x256xbf16>
    %cst = arith.constant dense<0.000000e+00> : vector<256x128xf32>
    %9 = tpu.matmul %8, %7, %cst {dimension_numbers = #tpu.dot_dimension_numbers<[1], [0], [0], [1], [0, 0, 1, 1], [], []>} : vector<256x256xbf16>, vector<256x128xbf16>, vector<256x128xf32> -> vector<256x128xf32>
    %c0_7 = arith.constant 0 : index
    %c0_8 = arith.constant 0 : index
    %10 = vector.load %arg5[%c0_7, %c0_8] : memref<256x128xf32, #tpu.memory_space<vmem>>, vector<256x128xf32>
    tpu.vector_store %arg5[%c0_7, %c0_8], %9 {strides = array<i32>} : memref<256x128xf32, #tpu.memory_space<vmem>>, vector<256x128xf32>,
    %c0_9 = arith.constant 0 : index
    %c0_10 = arith.constant 0 : index
    %11 = vector.load %arg4[%c0_9, %c0_10] : memref<256x128xf32, #tpu.memory_space<vmem>>, vector<256x128xf32>
    %12 = arith.addf %11, %9 : vector<256x128xf32>
    %c0_11 = arith.constant 0 : index
    %c0_12 = arith.constant 0 : index
    %13 = vector.load %arg4[%c0_11, %c0_12] : memref<256x128xf32, #tpu.memory_space<vmem>>, vector<256x128xf32>
    tpu.vector_store %arg4[%c0_11, %c0_12], %12 {strides = array<i32>} : memref<256x128xf32, #tpu.memory_space<vmem>>, vector<256x128xf32>,
    %c2_i32 = arith.constant 2 : i32
    %14 = arith.cmpi eq, %arg0, %c2_i32 : i32
    %15 = arith.extui %14 : i1 to i32
    %c0_i32_13 = arith.constant 0 : i32
    %16 = arith.cmpi ne, %15, %c0_i32_13 : i32
    scf.if %16 {
      %c0_14 = arith.constant 0 : index
      %c0_15 = arith.constant 0 : index
      %17 = vector.load %arg4[%c0_14, %c0_15] : memref<256x128xf32, #tpu.memory_space<vmem>>, vector<256x128xf32>
      %cst_16 = arith.constant 2.500000e-01 : f32
      %18 = vector.broadcast %cst_16 : f32 to vector<256x128xf32>
      %19 = arith.mulf %17, %18 : vector<256x128xf32>
      %c0_17 = arith.constant 0 : index
      %c0_18 = arith.constant 0 : index
      %20 = vector.load %arg4[%c0_17, %c0_18] : memref<256x128xf32, #tpu.memory_space<vmem>>, vector<256x128xf32>
      tpu.vector_store %arg4[%c0_17, %c0_18], %19 {strides = array<i32>} : memref<256x128xf32, #tpu.memory_space<vmem>>, vector<256x128xf32>,
    } else {
    }
    return
  }
  func.func @transform_0(%arg0: i32) -> (i32, i32) {
    %c0_i32 = arith.constant 0 : i32
    %c0_i32_0 = arith.constant 0 : i32
    %c0_i32_1 = arith.constant 0 : i32
    return %c0_i32, %c0_i32_0 : i32, i32
  }
  func.func @transform_1(%arg0: i32) -> (i32, i32) {
    %c0_i32 = arith.constant 0 : i32
    %c0_i32_0 = arith.constant 0 : i32
    %c0_i32_1 = arith.constant 0 : i32
    return %c0_i32, %c0_i32_0 : i32, i32
  }
  func.func @transform_2(%arg0: i32) -> (i32, i32, i32) {
    %c0_i32 = arith.constant 0 : i32
    %c0_i32_0 = arith.constant 0 : i32
    %c0_i32_1 = arith.constant 0 : i32
    return %arg0, %c0_i32, %c0_i32_0 : i32, i32, i32
  }
  func.func @transform_3(%arg0: i32) -> (i32, i32) {
    %c0_i32 = arith.constant 0 : i32
    %c0_i32_0 = arith.constant 0 : i32
    %c0_i32_1 = arith.constant 0 : i32
    return %c0_i32, %c0_i32_0 : i32, i32
  }
}

</mosaic_0001>

<llo_original>
// kernel: tpu_custom_call.1
$region0: #{tpu_custom_call.1}
  #allocation0 [shape = 'u32[]', space=smem, size = 0x4, offset = 0x4, fixed_abs, tag = 'smem constant byte address 0x4 - core index']
  #allocation1 [shape = 'u32[72,128]{1,0:T(1,128)}', space=vmem, size = 0x9000, scoped, tag = 'internal scratch']
  #allocation2 [shape = 'f32[256,128]{1,0:T(8,128)}', space=vmem, size = 0x20000, scoped, tag = 'scratch operand']
  %s0 = inlined_call_operand.hbm [shape: bf16[256,256], index: 0, kind: input, shape index: {}]
  %s1 = inlined_call_operand.hbm [shape: f32[256,128], index: 1, kind: input, shape index: {}]
  %s2 = inlined_call_operand.hbm [shape: f32[3,256,128], index: 2, kind: input, shape index: {}]
  %s3 = inlined_call_operand.hbm [shape: f32[256,128], index: 3, kind: output, shape index: {}]
  %s4 = sld [smem:[#allocation0]]
  $region65: #{tpu_custom_call.1} parent=0
    _
  %s6 = ssub.s32 1, %s4
  %s7 = scalar_select 0, %s6, %s4
  $region1: #{tpu_custom_call.1} parent=0
    #allocation3 [shape = 'u8[131072]{0}', space=vmem, size = 0x20000, scoped, tag = 'input window, operand 0, single buffered']
    #allocation4 [shape = 's32[2]{0}', space=sflag, size = 0x8, scoped, tag = 'scoped memory for tpu_custom_call.1']
    #allocation5 [shape = 's32[2]{0}', space=sflag, size = 0x8, scoped, tag = 'scoped memory for tpu_custom_call.1']
    #allocation6 [shape = 'u8[131072]{0}', space=vmem, size = 0x20000, scoped, tag = 'input window, operand 1, single buffered']
    #allocation7 [shape = 's32[1]{0}', space=sflag, size = 0x4, scoped, tag = 'scoped memory for tpu_custom_call.1']
    #allocation8 [shape = 'u8[262144]{0}', space=vmem, size = 0x40000, scoped, tag = 'input window, operand 2']
    #allocation9 [shape = 'u8[131072]{0}', space=vmem, size = 0x20000, scoped, tag = 'output window, operand 0, single buffered']
    %8 = vsyncpa [#allocation4], 0
    %9 = vsyncpa [#allocation7], 0
    %10 = vsyncpa [#allocation5], 0
    loop: start=0, step=1, limit=5
    $region2: #{tpu_custom_call.1} parent=1 // loop_pre_header
      _
    $region3: #{tpu_custom_call.1} parent=1 // loop_header
      %s12 = sphi 0, %s16
      %p13 = scmp.ge.s32.totalorder %s12, 5
      %s20 = sphi 0, %s20
      %s22 = sphi 0, %s20
      %s23 = sphi 0, %s22
      %s37 = sphi 0, %s23
      %s41 = sphi 0, %s41
      %s43 = sphi 0, %s41
      %s44 = sphi 0, %s43
      %s58 = sphi 0, %s44
      %s64 = sphi 0, %s66
      %s67 = sphi 0, %s64
      %s68 = sphi 0, %s67
      %s84 = sphi 0, %s68
      %s88 = sphi 0, %s88
      %s90 = sphi 0, %s88
      %s91 = sphi 0, %s90
      %s105 = sphi 0, %s91
    $region4: #{tpu_custom_call.1} parent=1 // loop_header_branch
      %15 = sbr.rel (%p13) target = $region8
    $region5: #{tpu_custom_call.1} parent=1 // loop_body
      %s17 = ssub.s32 %s12, 1
      %s18 = ssub.s32 %s12, 2
      %s19 = sadd.s32 %s12, 1
      %s21 = sadd.s32 %s20, 1
      %p24 = scmp.eq.s32.totalorder %s12, 2
      %p25 = scmp.ne.s32.totalorder %s20, %s22
      %p26 = scmp.eq.s32.totalorder %s12, 0
      %p27 = por %p25, %p26
      %p28 = scmp.ne.s32.totalorder %s20, %s22
      %p29 = scmp.eq.s32.totalorder %s17, 2
      %p30 = por %p28, %p29
      %p31 = scmp.ne.s32.totalorder %s22, %s23
      %p32 = scmp.eq.s32.totalorder %s17, 0
      %p33 = por %p31, %p32
      %p34 = scmp.ne.s32.totalorder %s22, %s23
      %p35 = scmp.eq.s32.totalorder %s18, 2
      %p36 = por %p34, %p35
      %p38 = scmp.ne.s32.totalorder %s23, %s37
      %p39 = scmp.eq.s32.totalorder %s18, 0
      %p40 = por %p38, %p39
      %s42 = sadd.s32 %s41, 1
      %p45 = scmp.eq.s32.totalorder %s12, 2
      %p46 = scmp.ne.s32.totalorder %s41, %s43
      %p47 = scmp.eq.s32.totalorder %s12, 0
      %p48 = por %p46, %p47
      %p49 = scmp.ne.s32.totalorder %s41, %s43
      %p50 = scmp.eq.s32.totalorder %s17, 2
      %p51 = por %p49, %p50
      %p52 = scmp.ne.s32.totalorder %s43, %s44
      %p53 = scmp.eq.s32.totalorder %s17, 0
      %p54 = por %p52, %p53
      %p55 = scmp.ne.s32.totalorder %s43, %s44
      %p56 = scmp.eq.s32.totalorder %s18, 2
      %p57 = por %p55, %p56
      %p59 = scmp.ne.s32.totalorder %s44, %s58
      %p60 = scmp.eq.s32.totalorder %s18, 0
      %p61 = por %p59, %p60
      %s62 = ssub.s32 %s12, %s19
      %p63 = scmp.eq.s32.totalorder %s62, 0
      %s65 = sadd.s32 %s64, 1
      %s66 = scalar_select %p63, %s64, %s65
      %p69 = pneg %p63
      %p70 = scmp.eq.s32.totalorder %s12, 2
      %p71 = por %p69, %p70
      %p72 = scmp.ne.s32.totalorder %s64, %s67
      %p73 = scmp.eq.s32.totalorder %s12, 0
      %p74 = por %p72, %p73
      %p75 = scmp.ne.s32.totalorder %s64, %s67
      %p76 = scmp.eq.s32.totalorder %s17, 2
      %p77 = por %p75, %p76
      %p78 = scmp.ne.s32.totalorder %s67, %s68
      %p79 = scmp.eq.s32.totalorder %s17, 0
      %p80 = por %p78, %p79
      %p81 = scmp.ne.s32.totalorder %s67, %s68
      %p82 = scmp.eq.s32.totalorder %s18, 2
      %p83 = por %p81, %p82
      %p85 = scmp.ne.s32.totalorder %s68, %s84
      %p86 = scmp.eq.s32.totalorder %s18, 0
      %p87 = por %p85, %p86
      %s89 = sadd.s32 %s88, 1
      %p92 = scmp.eq.s32.totalorder %s12, 2
      %p93 = scmp.ne.s32.totalorder %s88, %s90
      %p94 = scmp.eq.s32.totalorder %s12, 0
      %p95 = por %p93, %p94
      %p96 = scmp.ne.s32.totalorder %s88, %s90
      %p97 = scmp.eq.s32.totalorder %s17, 2
      %p98 = por %p96, %p97
      %p99 = scmp.ne.s32.totalorder %s90, %s91
      %p100 = scmp.eq.s32.totalorder %s17, 0
      %p101 = por %p99, %p100
      %p102 = scmp.ne.s32.totalorder %s90, %s91
      %p103 = scmp.eq.s32.totalorder %s18, 2
      %p104 = por %p102, %p103
      %p106 = scmp.ne.s32.totalorder %s91, %s105
      %p107 = scmp.eq.s32.totalorder %s18, 0
      %p108 = por %p106, %p107
      %p109 = scmp.le.s32.totalorder 1, %s12
      %p110 = scmp.lt.s32.totalorder %s12, 4
      %p111 = pnand %p109, %p110
      %p112 = pneg %p111
      // Predicated region
      $region9: #{tpu_custom_call.1} parent=5 // pred_check
        _
      $region10: #{tpu_custom_call.1} parent=5 // pred_check_branch
        %114 = sbr.rel (%p111) target = $region12
      $region11: #{tpu_custom_call.1} parent=5 // pred_region
        %s115 = ssub.s32 %s12, 1
        // Predicated region
        $region13: #{tpu_custom_call.1} parent=11 // pred_check
          %p116 = pneg %p33
        $region14: #{tpu_custom_call.1} parent=11 // pred_check_branch
          %118 = sbr.rel (%p116) target = $region16
        $region15: #{tpu_custom_call.1} parent=11 // pred_region
          %120 = vsyncadd [#allocation4], 0
          %s121 = sshll.u32 %s0, 4
          %s122 = int_to_ptr.hbm [resolvable:$true] %s121
          %s123 = sshll.u32 [#allocation3], 4
          %s124 = int_to_ptr.vmem [resolvable:$true] %s123
          %129 = dma.hbm_to_vmem [thread:$0]  %s122, 4096, %s124, [#allocation4], 128, 128, 8
        $region16: #{tpu_custom_call.1} parent=11 // pred_fallthru
          _
        // Predicated region
        $region17: #{tpu_custom_call.1} parent=11 // pred_check
          %p130 = pneg %p54
        $region18: #{tpu_custom_call.1} parent=11 // pred_check_branch
          %132 = sbr.rel (%p130) target = $region20
        $region19: #{tpu_custom_call.1} parent=11 // pred_region
          %134 = vsyncadd [#allocation7], 0
          %s135 = sshll.u32 %s1, 4
          %s136 = int_to_ptr.hbm [resolvable:$true] %s135
          %s137 = sshll.u32 [#allocation6], 4
          %s138 = int_to_ptr.vmem [resolvable:$true] %s137
          %143 = dma.hbm_to_vmem [thread:$0]  %s136, 4096, %s138, [#allocation7], 128, 128, 8
        $region20: #{tpu_custom_call.1} parent=11 // pred_fallthru
          _
      $region12: #{tpu_custom_call.1} parent=5 // pred_fallthru
        _
      %p144 = scmp.lt.s32.totalorder %s12, 3
      // Predicated region
      $region21: #{tpu_custom_call.1} parent=5 // pred_check
        %p145 = pneg %p144
      $region22: #{tpu_custom_call.1} parent=5 // pred_check_branch
        %147 = sbr.rel (%p145) target = $region24
      $region23: #{tpu_custom_call.1} parent=5 // pred_region
        // Predicated region
        $region25: #{tpu_custom_call.1} parent=23 // pred_check
          %p148 = pneg %p74
        $region26: #{tpu_custom_call.1} parent=23 // pred_check_branch
          %150 = sbr.rel (%p148) target = $region28
        $region27: #{tpu_custom_call.1} parent=23 // pred_region
          %s151 = sand.u32 %s12, 1
          %s152 = scalar_lea.sflag [#allocation4], %s151
          %s153 = sand.u32 %s64, 1
          %s154 = smul.addr %s153, 256
          %s155 = scalar_lea.vmem [#allocation8], %s154
          %157 = vsyncadd %s152, 0
          %s158 = smul.addr %s12, 32
          %s159 = smul.addr %s158, 8
          %s160 = scalar_lea.hbm %s2, %s159
          %s161 = sshll.u32 %s160, 4
          %s162 = int_to_ptr.hbm [resolvable:$true] %s161
          %s163 = sshll.u32 %s155, 4
          %s164 = int_to_ptr.vmem [resolvable:$true] %s163
          %169 = dma.hbm_to_vmem [thread:$0]  %s162, 4096, %s164, %s152, 128, 128, 8
        $region28: #{tpu_custom_call.1} parent=23 // pred_fallthru
          _
      $region24: #{tpu_custom_call.1} parent=5 // pred_fallthru
        _
      %p170 = scmp.le.s32.totalorder 1, %s12
      %p171 = scmp.lt.s32.totalorder %s12, 4
      %p172 = pnand %p170, %p171
      %p173 = pneg %p172
      // Predicated region
      $region29: #{tpu_custom_call.1} parent=5 // pred_check
        _
      $region30: #{tpu_custom_call.1} parent=5 // pred_check_branch
        %175 = sbr.rel (%p172) target = $region32
      $region31: #{tpu_custom_call.1} parent=5 // pred_region
        %s176 = ssub.s32 %s12, 1
        // Predicated region
        $region33: #{tpu_custom_call.1} parent=31 // pred_check
          %p177 = pneg %p33
        $region34: #{tpu_custom_call.1} parent=31 // pred_check_branch
          %179 = sbr.rel (%p177) target = $region36
        $region35: #{tpu_custom_call.1} parent=31 // pred_region
          %181 = dma.done [#allocation4], 4096
        $region36: #{tpu_custom_call.1} parent=31 // pred_fallthru
          _
        // Predicated region
        $region37: #{tpu_custom_call.1} parent=31 // pred_check
          %p182 = pneg %p54
        $region38: #{tpu_custom_call.1} parent=31 // pred_check_branch
          %184 = sbr.rel (%p182) target = $region40
        $region39: #{tpu_custom_call.1} parent=31 // pred_region
          %186 = dma.done [#allocation7], 4096
        $region40: #{tpu_custom_call.1} parent=31 // pred_fallthru
          _
        %s187 = sand.u32 %s17, 1
        %s188 = scalar_lea.sflag [#allocation4], %s187
        %s189 = sand.u32 %s67, 1
        %s190 = smul.addr %s189, 256
        %s191 = scalar_lea.vmem [#allocation8], %s190
        // Predicated region
        $region41: #{tpu_custom_call.1} parent=31 // pred_check
          %p192 = pneg %p80
        $region42: #{tpu_custom_call.1} parent=31 // pred_check_branch
          %194 = sbr.rel (%p192) target = $region44
        $region43: #{tpu_custom_call.1} parent=31 // pred_region
          %196 = dma.done %s188, 4096
        $region44: #{tpu_custom_call.1} parent=31 // pred_fallthru
          _
        %p197 = pneg %p33
        %p198 = pneg %p30
        %p199 = pneg %p54
        %p200 = pneg %p51
        %s201 = sand.u32 %s17, 1
        %s202 = scalar_lea.sflag [#allocation4], %s201
        %s203 = sand.u32 %s67, 1
        %s204 = smul.addr %s203, 256
        %s205 = scalar_lea.vmem [#allocation8], %s204
        %p206 = pneg %p80
        %p207 = pneg %p77
        %p208 = pneg %p101
        %p209 = pneg %p98
        %p210 = scmp.eq.s32.totalorder %s17, 0
        // Predicated region
        $region45: #{tpu_custom_call.1} parent=31 // pred_check
          %p211 = pneg %p210
        $region46: #{tpu_custom_call.1} parent=31 // pred_check_branch
          %213 = sbr.rel (%p211) target = $region48
        $region47: #{tpu_custom_call.1} parent=31 // pred_region
          %v214 = vld [vmem:[#allocation6] sm:$0xff]
          %v215 = vld [vmem:[#allocation6 + $0x8] sm:$0xff]
          %v216 = vld [vmem:[#allocation6 + $0x10] sm:$0xff]
          %v217 = vld [vmem:[#allocation6 + $0x18] sm:$0xff]
          %v218 = vld [vmem:[#allocation6 + $0x20] sm:$0xff]
          %v219 = vld [vmem:[#allocation6 + $0x28] sm:$0xff]
          %v220 = vld [vmem:[#allocation6 + $0x30] sm:$0xff]
          %v221 = vld [vmem:[#allocation6 + $0x38] sm:$0xff]
          %v222 = vld [vmem:[#allocation6 + $0x40] sm:$0xff]
          %v223 = vld [vmem:[#allocation6 + $0x48] sm:$0xff]
          %v224 = vld [vmem:[#allocation6 + $0x50] sm:$0xff]
          %v225 = vld [vmem:[#allocation6 + $0x58] sm:$0xff]
          %v226 = vld [vmem:[#allocation6 + $0x60] sm:$0xff]
          %v227 = vld [vmem:[#allocation6 + $0x68] sm:$0xff]
          %v228 = vld [vmem:[#allocation6 + $0x70] sm:$0xff]
          %v229 = vld [vmem:[#allocation6 + $0x78] sm:$0xff]
          %v230 = vld [vmem:[#allocation6 + $0x80] sm:$0xff]
          %v231 = vld [vmem:[#allocation6 + $0x88] sm:$0xff]
          %v232 = vld [vmem:[#allocation6 + $0x90] sm:$0xff]
          %v233 = vld [vmem:[#allocation6 + $0x98] sm:$0xff]
          %v234 = vld [vmem:[#allocation6 + $0xa0] sm:$0xff]
          %v235 = vld [vmem:[#allocation6 + $0xa8] sm:$0xff]
          %v236 = vld [vmem:[#allocation6 + $0xb0] sm:$0xff]
          %v237 = vld [vmem:[#allocation6 + $0xb8] sm:$0xff]
          %v238 = vld [vmem:[#allocation6 + $0xc0] sm:$0xff]
          %v239 = vld [vmem:[#allocation6 + $0xc8] sm:$0xff]
          %v240 = vld [vmem:[#allocation6 + $0xd0] sm:$0xff]
          %v241 = vld [vmem:[#allocation6 + $0xd8] sm:$0xff]
          %v242 = vld [vmem:[#allocation6 + $0xe0] sm:$0xff]
          %v243 = vld [vmem:[#allocation6 + $0xe8] sm:$0xff]
          %v244 = vld [vmem:[#allocation6 + $0xf0] sm:$0xff]
          %v245 = vld [vmem:[#allocation6 + $0xf8] sm:$0xff]
          %246 = vst [vmem:[#allocation2] sm:$0xff] %v214
          %247 = vst [vmem:[#allocation2 + $0x8] sm:$0xff] %v215
          %248 = vst [vmem:[#allocation2 + $0x10] sm:$0xff] %v216
          %249 = vst [vmem:[#allocation2 + $0x18] sm:$0xff] %v217
          %250 = vst [vmem:[#allocation2 + $0x20] sm:$0xff] %v218
          %251 = vst [vmem:[#allocation2 + $0x28] sm:$0xff] %v219
          %252 = vst [vmem:[#allocation2 + $0x30] sm:$0xff] %v220
          %253 = vst [vmem:[#allocation2 + $0x38] sm:$0xff] %v221
          %254 = vst [vmem:[#allocation2 + $0x40] sm:$0xff] %v222
          %255 = vst [vmem:[#allocation2 + $0x48] sm:$0xff] %v223
          %256 = vst [vmem:[#allocation2 + $0x50] sm:$0xff] %v224
          %257 = vst [vmem:[#allocation2 + $0x58] sm:$0xff] %v225
          %258 = vst [vmem:[#allocation2 + $0x60] sm:$0xff] %v226
          %259 = vst [vmem:[#allocation2 + $0x68] sm:$0xff] %v227
          %260 = vst [vmem:[#allocation2 + $0x70] sm:$0xff] %v228
          %261 = vst [vmem:[#allocation2 + $0x78] sm:$0xff] %v229
          %262 = vst [vmem:[#allocation2 + $0x80] sm:$0xff] %v230
          %263 = vst [vmem:[#allocation2 + $0x88] sm:$0xff] %v231
          %264 = vst [vmem:[#allocation2 + $0x90] sm:$0xff] %v232
          %265 = vst [vmem:[#allocation2 + $0x98] sm:$0xff] %v233
          %266 = vst [vmem:[#allocation2 + $0xa0] sm:$0xff] %v234
          %267 = vst [vmem:[#allocation2 + $0xa8] sm:$0xff] %v235
          %268 = vst [vmem:[#allocation2 + $0xb0] sm:$0xff] %v236
          %269 = vst [vmem:[#allocation2 + $0xb8] sm:$0xff] %v237
          %270 = vst [vmem:[#allocation2 + $0xc0] sm:$0xff] %v238
          %271 = vst [vmem:[#allocation2 + $0xc8] sm:$0xff] %v239
          %272 = vst [vmem:[#allocation2 + $0xd0] sm:$0xff] %v240
          %273 = vst [vmem:[#allocation2 + $0xd8] sm:$0xff] %v241
          %274 = vst [vmem:[#allocation2 + $0xe0] sm:$0xff] %v242
          %275 = vst [vmem:[#allocation2 + $0xe8] sm:$0xff] %v243
          %276 = vst [vmem:[#allocation2 + $0xf0] sm:$0xff] %v244
          %277 = vst [vmem:[#allocation2 + $0xf8] sm:$0xff] %v245
          %v278 = vld [vmem:[#allocation6] sm:$0xff]
          %v279 = vld [vmem:[#allocation6 + $0x8] sm:$0xff]
          %v280 = vld [vmem:[#allocation6 + $0x10] sm:$0xff]
          %v281 = vld [vmem:[#allocation6 + $0x18] sm:$0xff]
          %v282 = vld [vmem:[#allocation6 + $0x20] sm:$0xff]
          %v283 = vld [vmem:[#allocation6 + $0x28] sm:$0xff]
          %v284 = vld [vmem:[#allocation6 + $0x30] sm:$0xff]
          %v285 = vld [vmem:[#allocation6 + $0x38] sm:$0xff]
          %v286 = vld [vmem:[#allocation6 + $0x40] sm:$0xff]
          %v287 = vld [vmem:[#allocation6 + $0x48] sm:$0xff]
          %v288 = vld [vmem:[#allocation6 + $0x50] sm:$0xff]
          %v289 = vld [vmem:[#allocation6 + $0x58] sm:$0xff]
          %v290 = vld [vmem:[#allocation6 + $0x60] sm:$0xff]
          %v291 = vld [vmem:[#allocation6 + $0x68] sm:$0xff]
          %v292 = vld [vmem:[#allocation6 + $0x70] sm:$0xff]
          %v293 = vld [vmem:[#allocation6 + $0x78] sm:$0xff]
          %v294 = vld [vmem:[#allocation6 + $0x80] sm:$0xff]
          %v295 = vld [vmem:[#allocation6 + $0x88] sm:$0xff]
          %v296 = vld [vmem:[#allocation6 + $0x90] sm:$0xff]
          %v297 = vld [vmem:[#allocation6 + $0x98] sm:$0xff]
          %v298 = vld [vmem:[#allocation6 + $0xa0] sm:$0xff]
          %v299 = vld [vmem:[#allocation6 + $0xa8] sm:$0xff]
          %v300 = vld [vmem:[#allocation6 + $0xb0] sm:$0xff]
          %v301 = vld [vmem:[#allocation6 + $0xb8] sm:$0xff]
          %v302 = vld [vmem:[#allocation6 + $0xc0] sm:$0xff]
          %v303 = vld [vmem:[#allocation6 + $0xc8] sm:$0xff]
          %v304 = vld [vmem:[#allocation6 + $0xd0] sm:$0xff]
          %v305 = vld [vmem:[#allocation6 + $0xd8] sm:$0xff]
          %v306 = vld [vmem:[#allocation6 + $0xe0] sm:$0xff]
          %v307 = vld [vmem:[#allocation6 + $0xe8] sm:$0xff]
          %v308 = vld [vmem:[#allocation6 + $0xf0] sm:$0xff]
          %v309 = vld [vmem:[#allocation6 + $0xf8] sm:$0xff]
          %310 = vst [vmem:[#allocation9] sm:$0xff] %v278
          %311 = vst [vmem:[#allocation9 + $0x8] sm:$0xff] %v279
          %312 = vst [vmem:[#allocation9 + $0x10] sm:$0xff] %v280
          %313 = vst [vmem:[#allocation9 + $0x18] sm:$0xff] %v281
          %314 = vst [vmem:[#allocation9 + $0x20] sm:$0xff] %v282
          %315 = vst [vmem:[#allocation9 + $0x28] sm:$0xff] %v283
          %316 = vst [vmem:[#allocation9 + $0x30] sm:$0xff] %v284
          %317 = vst [vmem:[#allocation9 + $0x38] sm:$0xff] %v285
          %318 = vst [vmem:[#allocation9 + $0x40] sm:$0xff] %v286
          %319 = vst [vmem:[#allocation9 + $0x48] sm:$0xff] %v287
          %320 = vst [vmem:[#allocation9 + $0x50] sm:$0xff] %v288
          %321 = vst [vmem:[#allocation9 + $0x58] sm:$0xff] %v289
          %322 = vst [vmem:[#allocation9 + $0x60] sm:$0xff] %v290
          %323 = vst [vmem:[#allocation9 + $0x68] sm:$0xff] %v291
          %324 = vst [vmem:[#allocation9 + $0x70] sm:$0xff] %v292
          %325 = vst [vmem:[#allocation9 + $0x78] sm:$0xff] %v293
          %326 = vst [vmem:[#allocation9 + $0x80] sm:$0xff] %v294
          %327 = vst [vmem:[#allocation9 + $0x88] sm:$0xff] %v295
          %328 = vst [vmem:[#allocation9 + $0x90] sm:$0xff] %v296
          %329 = vst [vmem:[#allocation9 + $0x98] sm:$0xff] %v297
          %330 = vst [vmem:[#allocation9 + $0xa0] sm:$0xff] %v298
          %331 = vst [vmem:[#allocation9 + $0xa8] sm:$0xff] %v299
          %332 = vst [vmem:[#allocation9 + $0xb0] sm:$0xff] %v300
          %333 = vst [vmem:[#allocation9 + $0xb8] sm:$0xff] %v301
          %334 = vst [vmem:[#allocation9 + $0xc0] sm:$0xff] %v302
          %335 = vst [vmem:[#allocation9 + $0xc8] sm:$0xff] %v303
          %336 = vst [vmem:[#allocation9 + $0xd0] sm:$0xff] %v304
          %337 = vst [vmem:[#allocation9 + $0xd8] sm:$0xff] %v305
          %338 = vst [vmem:[#allocation9 + $0xe0] sm:$0xff] %v306
          %339 = vst [vmem:[#allocation9 + $0xe8] sm:$0xff] %v307
          %340 = vst [vmem:[#allocation9 + $0xf0] sm:$0xff] %v308
          %341 = vst [vmem:[#allocation9 + $0xf8] sm:$0xff] %v309
        $region48: #{tpu_custom_call.1} parent=31 // pred_fallthru
          _
        %v342 = vld [vmem:[#allocation2] sm:$0xff]
        %v343 = vld [vmem:[#allocation2 + $0x8] sm:$0xff]
        %v344 = vld [vmem:[#allocation2 + $0x10] sm:$0xff]
        %v345 = vld [vmem:[#allocation2 + $0x18] sm:$0xff]
        %v346 = vld [vmem:[#allocation2 + $0x20] sm:$0xff]
        %v347 = vld [vmem:[#allocation2 + $0x28] sm:$0xff]
        %v348 = vld [vmem:[#allocation2 + $0x30] sm:$0xff]
        %v349 = vld [vmem:[#allocation2 + $0x38] sm:$0xff]
        %v350 = vld [vmem:[#allocation2 + $0x40] sm:$0xff]
        %v351 = vld [vmem:[#allocation2 + $0x48] sm:$0xff]
        %v352 = vld [vmem:[#allocation2 + $0x50] sm:$0xff]
        %v353 = vld [vmem:[#allocation2 + $0x58] sm:$0xff]
        %v354 = vld [vmem:[#allocation2 + $0x60] sm:$0xff]
        %v355 = vld [vmem:[#allocation2 + $0x68] sm:$0xff]
        %v356 = vld [vmem:[#allocation2 + $0x70] sm:$0xff]
        %v357 = vld [vmem:[#allocation2 + $0x78] sm:$0xff]
        %v358 = vld [vmem:[#allocation2 + $0x80] sm:$0xff]
        %v359 = vld [vmem:[#allocation2 + $0x88] sm:$0xff]
        %v360 = vld [vmem:[#allocation2 + $0x90] sm:$0xff]
        %v361 = vld [vmem:[#allocation2 + $0x98] sm:$0xff]
        %v362 = vld [vmem:[#allocation2 + $0xa0] sm:$0xff]
        %v363 = vld [vmem:[#allocation2 + $0xa8] sm:$0xff]
        %v364 = vld [vmem:[#allocation2 + $0xb0] sm:$0xff]
        %v365 = vld [vmem:[#allocation2 + $0xb8] sm:$0xff]
        %v366 = vld [vmem:[#allocation2 + $0xc0] sm:$0xff]
        %v367 = vld [vmem:[#allocation2 + $0xc8] sm:$0xff]
        %v368 = vld [vmem:[#allocation2 + $0xd0] sm:$0xff]
        %v369 = vld [vmem:[#allocation2 + $0xd8] sm:$0xff]
        %v370 = vld [vmem:[#allocation2 + $0xe0] sm:$0xff]
        %v371 = vld [vmem:[#allocation2 + $0xe8] sm:$0xff]
        %v372 = vld [vmem:[#allocation2 + $0xf0] sm:$0xff]
        %v373 = vld [vmem:[#allocation2 + $0xf8] sm:$0xff]
        %v374 = vld [vmem:[%s191] sm:$0xff]
        %v375 = vld [vmem:[%s191 + $0x8] sm:$0xff]
        %v376 = vld [vmem:[%s191 + $0x10] sm:$0xff]
        %v377 = vld [vmem:[%s191 + $0x18] sm:$0xff]
        %v378 = vld [vmem:[%s191 + $0x20] sm:$0xff]
        %v379 = vld [vmem:[%s191 + $0x28] sm:$0xff]
        %v380 = vld [vmem:[%s191 + $0x30] sm:$0xff]
        %v381 = vld [vmem:[%s191 + $0x38] sm:$0xff]
        %v382 = vld [vmem:[%s191 + $0x40] sm:$0xff]
        %v383 = vld [vmem:[%s191 + $0x48] sm:$0xff]
        %v384 = vld [vmem:[%s191 + $0x50] sm:$0xff]
        %v385 = vld [vmem:[%s191 + $0x58] sm:$0xff]
        %v386 = vld [vmem:[%s191 + $0x60] sm:$0xff]
        %v387 = vld [vmem:[%s191 + $0x68] sm:$0xff]
        %v388 = vld [vmem:[%s191 + $0x70] sm:$0xff]
        %v389 = vld [vmem:[%s191 + $0x78] sm:$0xff]
        %v390 = vld [vmem:[%s191 + $0x80] sm:$0xff]
        %v391 = vld [vmem:[%s191 + $0x88] sm:$0xff]
        %v392 = vld [vmem:[%s191 + $0x90] sm:$0xff]
        %v393 = vld [vmem:[%s191 + $0x98] sm:$0xff]
        %v394 = vld [vmem:[%s191 + $0xa0] sm:$0xff]
        %v395 = vld [vmem:[%s191 + $0xa8] sm:$0xff]
        %v396 = vld [vmem:[%s191 + $0xb0] sm:$0xff]
        %v397 = vld [vmem:[%s191 + $0xb8] sm:$0xff]
        %v398 = vld [vmem:[%s191 + $0xc0] sm:$0xff]
        %v399 = vld [vmem:[%s191 + $0xc8] sm:$0xff]
        %v400 = vld [vmem:[%s191 + $0xd0] sm:$0xff]
        %v401 = vld [vmem:[%s191 + $0xd8] sm:$0xff]
        %v402 = vld [vmem:[%s191 + $0xe0] sm:$0xff]
        %v403 = vld [vmem:[%s191 + $0xe8] sm:$0xff]
        %v404 = vld [vmem:[%s191 + $0xf0] sm:$0xff]
        %v405 = vld [vmem:[%s191 + $0xf8] sm:$0xff]
        %v406 = vmul.f32 %v342, %v374
        %v407 = vmul.f32 %v343, %v375
        %v408 = vmul.f32 %v344, %v376
        %v409 = vmul.f32 %v345, %v377
        %v410 = vmul.f32 %v346, %v378
        %v411 = vmul.f32 %v347, %v379
        %v412 = vmul.f32 %v348, %v380
        %v413 = vmul.f32 %v349, %v381
        %v414 = vmul.f32 %v350, %v382
        %v415 = vmul.f32 %v351, %v383
        %v416 = vmul.f32 %v352, %v384
        %v417 = vmul.f32 %v353, %v385
        %v418 = vmul.f32 %v354, %v386
        %v419 = vmul.f32 %v355, %v387
        %v420 = vmul.f32 %v356, %v388
        %v421 = vmul.f32 %v357, %v389
        %v422 = vmul.f32 %v358, %v390
        %v423 = vmul.f32 %v359, %v391
        %v424 = vmul.f32 %v360, %v392
        %v425 = vmul.f32 %v361, %v393
        %v426 = vmul.f32 %v362, %v394
        %v427 = vmul.f32 %v363, %v395
        %v428 = vmul.f32 %v364, %v396
        %v429 = vmul.f32 %v365, %v397
        %v430 = vmul.f32 %v366, %v398
        %v431 = vmul.f32 %v367, %v399
        %v432 = vmul.f32 %v368, %v400
        %v433 = vmul.f32 %v369, %v401
        %v434 = vmul.f32 %v370, %v402
        %v435 = vmul.f32 %v371, %v403
        %v436 = vmul.f32 %v372, %v404
        %v437 = vmul.f32 %v373, %v405
        %v438 = vpack.c.bf16 %v407, %v406
        %v439 = vpack.c.bf16 %v409, %v408
        %v440 = vpack.c.bf16 %v411, %v410
        %v441 = vpack.c.bf16 %v413, %v412
        %v442 = vpack.c.bf16 %v415, %v414
        %v443 = vpack.c.bf16 %v417, %v416
        %v444 = vpack.c.bf16 %v419, %v418
        %v445 = vpack.c.bf16 %v421, %v420
        %v446 = vpack.c.bf16 %v423, %v422
        %v447 = vpack.c.bf16 %v425, %v424
        %v448 = vpack.c.bf16 %v427, %v426
        %v449 = vpack.c.bf16 %v429, %v428
        %v450 = vpack.c.bf16 %v431, %v430
        %v451 = vpack.c.bf16 %v433, %v432
        %v452 = vpack.c.bf16 %v435, %v434
        %v453 = vpack.c.bf16 %v437, %v436
        %v454 = vld [vmem:[#allocation3] sm:$0xff]
        %v455 = vld [vmem:[#allocation3 + $0x8] sm:$0xff]
        %v456 = vld [vmem:[#allocation3 + $0x10] sm:$0xff]
        %v457 = vld [vmem:[#allocation3 + $0x18] sm:$0xff]
        %v458 = vld [vmem:[#allocation3 + $0x20] sm:$0xff]
        %v459 = vld [vmem:[#allocation3 + $0x28] sm:$0xff]
        %v460 = vld [vmem:[#allocation3 + $0x30] sm:$0xff]
        %v461 = vld [vmem:[#allocation3 + $0x38] sm:$0xff]
        %v462 = vld [vmem:[#allocation3 + $0x40] sm:$0xff]
        %v463 = vld [vmem:[#allocation3 + $0x48] sm:$0xff]
        %v464 = vld [vmem:[#allocation3 + $0x50] sm:$0xff]
        %v465 = vld [vmem:[#allocation3 + $0x58] sm:$0xff]
        %v466 = vld [vmem:[#allocation3 + $0x60] sm:$0xff]
        %v467 = vld [vmem:[#allocation3 + $0x68] sm:$0xff]
        %v468 = vld [vmem:[#allocation3 + $0x70] sm:$0xff]
        %v469 = vld [vmem:[#allocation3 + $0x78] sm:$0xff]
        %v470 = vld [vmem:[#allocation3 + $0x80] sm:$0xff]
        %v471 = vld [vmem:[#allocation3 + $0x88] sm:$0xff]
        %v472 = vld [vmem:[#allocation3 + $0x90] sm:$0xff]
        %v473 = vld [vmem:[#allocation3 + $0x98] sm:$0xff]
        %v474 = vld [vmem:[#allocation3 + $0xa0] sm:$0xff]
        %v475 = vld [vmem:[#allocation3 + $0xa8] sm:$0xff]
        %v476 = vld [vmem:[#allocation3 + $0xb0] sm:$0xff]
        %v477 = vld [vmem:[#allocation3 + $0xb8] sm:$0xff]
        %v478 = vld [vmem:[#allocation3 + $0xc0] sm:$0xff]
        %v479 = vld [vmem:[#allocation3 + $0xc8] sm:$0xff]
        %v480 = vld [vmem:[#allocation3 + $0xd0] sm:$0xff]
        %v481 = vld [vmem:[#allocation3 + $0xd8] sm:$0xff]
        %v482 = vld [vmem:[#allocation3 + $0xe0] sm:$0xff]
        %v483 = vld [vmem:[#allocation3 + $0xe8] sm:$0xff]
        %v484 = vld [vmem:[#allocation3 + $0xf0] sm:$0xff]
        %v485 = vld [vmem:[#allocation3 + $0xf8] sm:$0xff]
        %v518 = vunpack.c.l.b16 %v454
        %v519 = vunpack.c.h.b16 %v454
        %v520 = vunpack.c.l.b16 %v455
        %v521 = vunpack.c.h.b16 %v455
        %v522 = vunpack.c.l.b16 %v456
        %v523 = vunpack.c.h.b16 %v456
        %v524 = vunpack.c.l.b16 %v457
        %v525 = vunpack.c.h.b16 %v457
        %v526 = vunpack.c.l.b16 %v458
        %v527 = vunpack.c.h.b16 %v458
        %v528 = vunpack.c.l.b16 %v459
        %v529 = vunpack.c.h.b16 %v459
        %v530 = vunpack.c.l.b16 %v460
        %v531 = vunpack.c.h.b16 %v460
        %v532 = vunpack.c.l.b16 %v461
        %v533 = vunpack.c.h.b16 %v461
        %v534 = vunpack.c.l.b16 %v462
        %v535 = vunpack.c.h.b16 %v462
        %v536 = vunpack.c.l.b16 %v463
        %v537 = vunpack.c.h.b16 %v463
        %v538 = vunpack.c.l.b16 %v464
        %v539 = vunpack.c.h.b16 %v464
        %v540 = vunpack.c.l.b16 %v465
        %v541 = vunpack.c.h.b16 %v465
        %v542 = vunpack.c.l.b16 %v466
        %v543 = vunpack.c.h.b16 %v466
        %v544 = vunpack.c.l.b16 %v467
        %v545 = vunpack.c.h.b16 %v467
        %v546 = vunpack.c.l.b16 %v468
        %v547 = vunpack.c.h.b16 %v468
        %v548 = vunpack.c.l.b16 %v469
        %v549 = vunpack.c.h.b16 %v469
        %v550 = vunpack.c.l.b16 %v470
        %v551 = vunpack.c.h.b16 %v470
        %v552 = vunpack.c.l.b16 %v471
        %v553 = vunpack.c.h.b16 %v471
        %v554 = vunpack.c.l.b16 %v472
        %v555 = vunpack.c.h.b16 %v472
        %v556 = vunpack.c.l.b16 %v473
        %v557 = vunpack.c.h.b16 %v473
        %v558 = vunpack.c.l.b16 %v474
        %v559 = vunpack.c.h.b16 %v474
        %v560 = vunpack.c.l.b16 %v475
        %v561 = vunpack.c.h.b16 %v475
        %v562 = vunpack.c.l.b16 %v476
        %v563 = vunpack.c.h.b16 %v476
        %v564 = vunpack.c.l.b16 %v477
        %v565 = vunpack.c.h.b16 %v477
        %v566 = vunpack.c.l.b16 %v478
        %v567 = vunpack.c.h.b16 %v478
        %v568 = vunpack.c.l.b16 %v479
        %v569 = vunpack.c.h.b16 %v479
        %v570 = vunpack.c.l.b16 %v480
        %v571 = vunpack.c.h.b16 %v480
        %v572 = vunpack.c.l.b16 %v481
        %v573 = vunpack.c.h.b16 %v481
        %v574 = vunpack.c.l.b16 %v482
        %v575 = vunpack.c.h.b16 %v482
        %v576 = vunpack.c.l.b16 %v483
        %v577 = vunpack.c.h.b16 %v483
        %v578 = vunpack.c.l.b16 %v484
        %v579 = vunpack.c.h.b16 %v484
        %v580 = vunpack.c.l.b16 %v485
        %v581 = vunpack.c.h.b16 %v485
        %v582 = vpack.c.b16 %v520, %v518
        %v583 = vpack.c.b16 %v521, %v519
        %v584 = vpack.c.b16 %v524, %v522
        %v585 = vpack.c.b16 %v525, %v523
        %v586 = vpack.c.b16 %v528, %v526
        %v587 = vpack.c.b16 %v529, %v527
        %v588 = vpack.c.b16 %v532, %v530
        %v589 = vpack.c.b16 %v533, %v531
        %v590 = vpack.c.b16 %v536, %v534
        %v591 = vpack.c.b16 %v537, %v535
        %v592 = vpack.c.b16 %v540, %v538
        %v593 = vpack.c.b16 %v541, %v539
        %v594 = vpack.c.b16 %v544, %v542
        %v595 = vpack.c.b16 %v545, %v543
        %v596 = vpack.c.b16 %v548, %v546
        %v597 = vpack.c.b16 %v549, %v547
        %v598 = vpack.c.b16 %v552, %v550
        %v599 = vpack.c.b16 %v553, %v551
        %v600 = vpack.c.b16 %v556, %v554
        %v601 = vpack.c.b16 %v557, %v555
        %v602 = vpack.c.b16 %v560, %v558
        %v603 = vpack.c.b16 %v561, %v559
        %v604 = vpack.c.b16 %v564, %v562
        %v605 = vpack.c.b16 %v565, %v563
        %v606 = vpack.c.b16 %v568, %v566
        %v607 = vpack.c.b16 %v569, %v567
        %v608 = vpack.c.b16 %v572, %v570
        %v609 = vpack.c.b16 %v573, %v571
        %v610 = vpack.c.b16 %v576, %v574
        %v611 = vpack.c.b16 %v577, %v575
        %v612 = vpack.c.b16 %v580, %v578
        %v613 = vpack.c.b16 %v581, %v579
        %646 = vmatpush.bf16.msra.mxu0 %v445
        %647 = vmatpush.bf16.msra.mxu0 %v444
        %648 = vmatpush.bf16.msra.mxu0 %v443
        %649 = vmatpush.bf16.msra.mxu0 %v442
        %650 = vmatpush.bf16.msra.mxu0 %v441
        %651 = vmatpush.bf16.msra.mxu0 %v440
        %652 = vmatpush.bf16.msra.mxu0 %v439
        %653 = vmatpush.bf16.msra.mxu0 %v438
        %654 = vmatmul.bf16.gmra.mxu0 %v582
        %v655 = vpop.f32.mrf.mxu0
        %v656 = vadd.f32 0.0, %v655
        %v657 = vpop.f32.mrf.mxu0
        %v658 = vadd.f32 0.0, %v657
        %659 = vmatmul.bf16.gmra.mxu0 %v584
        %v660 = vpop.f32.mrf.mxu0
        %v661 = vadd.f32 0.0, %v660
        %v662 = vpop.f32.mrf.mxu0
        %v663 = vadd.f32 0.0, %v662
        %664 = vmatmul.bf16.gmra.mxu0 %v586
        %v665 = vpop.f32.mrf.mxu0
        %v666 = vadd.f32 0.0, %v665
        %v667 = vpop.f32.mrf.mxu0
        %v668 = vadd.f32 0.0, %v667
        %669 = vmatmul.bf16.gmra.mxu0 %v588
        %v670 = vpop.f32.mrf.mxu0
        %v671 = vadd.f32 0.0, %v670
        %v672 = vpop.f32.mrf.mxu0
        %v673 = vadd.f32 0.0, %v672
        %674 = vmatmul.bf16.gmra.mxu0 %v590
        %v675 = vpop.f32.mrf.mxu0
        %v676 = vadd.f32 0.0, %v675
        %v677 = vpop.f32.mrf.mxu0
        %v678 = vadd.f32 0.0, %v677
        %679 = vmatmul.bf16.gmra.mxu0 %v592
        %v680 = vpop.f32.mrf.mxu0
        %v681 = vadd.f32 0.0, %v680
        %v682 = vpop.f32.mrf.mxu0
        %v683 = vadd.f32 0.0, %v682
        %684 = vmatmul.bf16.gmra.mxu0 %v594
        %v685 = vpop.f32.mrf.mxu0
        %v686 = vadd.f32 0.0, %v685
        %v687 = vpop.f32.mrf.mxu0
        %v688 = vadd.f32 0.0, %v687
        %689 = vmatmul.bf16.gmra.mxu0 %v596
        %v690 = vpop.f32.mrf.mxu0
        %v691 = vadd.f32 0.0, %v690
        %v692 = vpop.f32.mrf.mxu0
        %v693 = vadd.f32 0.0, %v692
        %694 = vmatmul.bf16.gmra.mxu0 %v598
        %v695 = vpop.f32.mrf.mxu0
        %v696 = vadd.f32 0.0, %v695
        %v697 = vpop.f32.mrf.mxu0
        %v698 = vadd.f32 0.0, %v697
        %699 = vmatmul.bf16.gmra.mxu0 %v600
        %v700 = vpop.f32.mrf.mxu0
        %v701 = vadd.f32 0.0, %v700
        %v702 = vpop.f32.mrf.mxu0
        %v703 = vadd.f32 0.0, %v702
        %704 = vmatmul.bf16.gmra.mxu0 %v602
        %v705 = vpop.f32.mrf.mxu0
        %v706 = vadd.f32 0.0, %v705
        %v707 = vpop.f32.mrf.mxu0
        %v708 = vadd.f32 0.0, %v707
        %709 = vmatmul.bf16.gmra.mxu0 %v604
        %v710 = vpop.f32.mrf.mxu0
        %v711 = vadd.f32 0.0, %v710
        %v712 = vpop.f32.mrf.mxu0
        %v713 = vadd.f32 0.0, %v712
        %714 = vmatmul.bf16.gmra.mxu0 %v606
        %v715 = vpop.f32.mrf.mxu0
        %v716 = vadd.f32 0.0, %v715
        %v717 = vpop.f32.mrf.mxu0
        %v718 = vadd.f32 0.0, %v717
        %719 = vmatmul.bf16.gmra.mxu0 %v608
        %v720 = vpop.f32.mrf.mxu0
        %v721 = vadd.f32 0.0, %v720
        %v722 = vpop.f32.mrf.mxu0
        %v723 = vadd.f32 0.0, %v722
        %724 = vmatmul.bf16.gmra.mxu0 %v610
        %v725 = vpop.f32.mrf.mxu0
        %v726 = vadd.f32 0.0, %v725
        %v727 = vpop.f32.mrf.mxu0
        %v728 = vadd.f32 0.0, %v727
        %729 = vmatmul.bf16.gmra.mxu0 %v612
        %v730 = vpop.f32.mrf.mxu0
        %v731 = vadd.f32 0.0, %v730
        %v732 = vpop.f32.mrf.mxu0
        %v733 = vadd.f32 0.0, %v732
        %734 = vdwg.mxu0
        %735 = vmatpush.bf16.msra.mxu0 %v453
        %736 = vmatpush.bf16.msra.mxu0 %v452
        %737 = vmatpush.bf16.msra.mxu0 %v451
        %738 = vmatpush.bf16.msra.mxu0 %v450
        %739 = vmatpush.bf16.msra.mxu0 %v449
        %740 = vmatpush.bf16.msra.mxu0 %v448
        %741 = vmatpush.bf16.msra.mxu0 %v447
        %742 = vmatpush.bf16.msra.mxu0 %v446
        %743 = vmatmul.bf16.gmra.mxu0 %v583
        %v744 = vpop.f32.mrf.mxu0
        %v745 = vadd.f32 %v656, %v744
        %v746 = vpop.f32.mrf.mxu0
        %v747 = vadd.f32 %v658, %v746
        %748 = vmatmul.bf16.gmra.mxu0 %v585
        %v749 = vpop.f32.mrf.mxu0
        %v750 = vadd.f32 %v661, %v749
        %v751 = vpop.f32.mrf.mxu0
        %v752 = vadd.f32 %v663, %v751
        %753 = vmatmul.bf16.gmra.mxu0 %v587
        %v754 = vpop.f32.mrf.mxu0
        %v755 = vadd.f32 %v666, %v754
        %v756 = vpop.f32.mrf.mxu0
        %v757 = vadd.f32 %v668, %v756
        %758 = vmatmul.bf16.gmra.mxu0 %v589
        %v759 = vpop.f32.mrf.mxu0
        %v760 = vadd.f32 %v671, %v759
        %v761 = vpop.f32.mrf.mxu0
        %v762 = vadd.f32 %v673, %v761
        %763 = vmatmul.bf16.gmra.mxu0 %v591
        %v764 = vpop.f32.mrf.mxu0
        %v765 = vadd.f32 %v676, %v764
        %v766 = vpop.f32.mrf.mxu0
        %v767 = vadd.f32 %v678, %v766
        %768 = vmatmul.bf16.gmra.mxu0 %v593
        %v769 = vpop.f32.mrf.mxu0
        %v770 = vadd.f32 %v681, %v769
        %v771 = vpop.f32.mrf.mxu0
        %v772 = vadd.f32 %v683, %v771
        %773 = vmatmul.bf16.gmra.mxu0 %v595
        %v774 = vpop.f32.mrf.mxu0
        %v775 = vadd.f32 %v686, %v774
        %v776 = vpop.f32.mrf.mxu0
        %v777 = vadd.f32 %v688, %v776
        %778 = vmatmul.bf16.gmra.mxu0 %v597
        %v779 = vpop.f32.mrf.mxu0
        %v780 = vadd.f32 %v691, %v779
        %v781 = vpop.f32.mrf.mxu0
        %v782 = vadd.f32 %v693, %v781
        %783 = vmatmul.bf16.gmra.mxu0 %v599
        %v784 = vpop.f32.mrf.mxu0
        %v785 = vadd.f32 %v696, %v784
        %v786 = vpop.f32.mrf.mxu0
        %v787 = vadd.f32 %v698, %v786
        %788 = vmatmul.bf16.gmra.mxu0 %v601
        %v789 = vpop.f32.mrf.mxu0
        %v790 = vadd.f32 %v701, %v789
        %v791 = vpop.f32.mrf.mxu0
        %v792 = vadd.f32 %v703, %v791
        %793 = vmatmul.bf16.gmra.mxu0 %v603
        %v794 = vpop.f32.mrf.mxu0
        %v795 = vadd.f32 %v706, %v794
        %v796 = vpop.f32.mrf.mxu0
        %v797 = vadd.f32 %v708, %v796
        %798 = vmatmul.bf16.gmra.mxu0 %v605
        %v799 = vpop.f32.mrf.mxu0
        %v800 = vadd.f32 %v711, %v799
        %v801 = vpop.f32.mrf.mxu0
        %v802 = vadd.f32 %v713, %v801
        %803 = vmatmul.bf16.gmra.mxu0 %v607
        %v804 = vpop.f32.mrf.mxu0
        %v805 = vadd.f32 %v716, %v804
        %v806 = vpop.f32.mrf.mxu0
        %v807 = vadd.f32 %v718, %v806
        %808 = vmatmul.bf16.gmra.mxu0 %v609
        %v809 = vpop.f32.mrf.mxu0
        %v810 = vadd.f32 %v721, %v809
        %v811 = vpop.f32.mrf.mxu0
        %v812 = vadd.f32 %v723, %v811
        %813 = vmatmul.bf16.gmra.mxu0 %v611
        %v814 = vpop.f32.mrf.mxu0
        %v815 = vadd.f32 %v726, %v814
        %v816 = vpop.f32.mrf.mxu0
        %v817 = vadd.f32 %v728, %v816
        %818 = vmatmul.bf16.gmra.mxu0 %v613
        %v819 = vpop.f32.mrf.mxu0
        %v820 = vadd.f32 %v731, %v819
        %v821 = vpop.f32.mrf.mxu0
        %v822 = vadd.f32 %v733, %v821
        %823 = vdwg.mxu0
        %824 = vst [vmem:[#allocation2] sm:$0xff] %v745
        %825 = vst [vmem:[#allocation2 + $0x8] sm:$0xff] %v747
        %826 = vst [vmem:[#allocation2 + $0x10] sm:$0xff] %v750
        %827 = vst [vmem:[#allocation2 + $0x18] sm:$0xff] %v752
        %828 = vst [vmem:[#allocation2 + $0x20] sm:$0xff] %v755
        %829 = vst [vmem:[#allocation2 + $0x28] sm:$0xff] %v757
        %830 = vst [vmem:[#allocation2 + $0x30] sm:$0xff] %v760
        %831 = vst [vmem:[#allocation2 + $0x38] sm:$0xff] %v762
        %832 = vst [vmem:[#allocation2 + $0x40] sm:$0xff] %v765
        %833 = vst [vmem:[#allocation2 + $0x48] sm:$0xff] %v767
        %834 = vst [vmem:[#allocation2 + $0x50] sm:$0xff] %v770
        %835 = vst [vmem:[#allocation2 + $0x58] sm:$0xff] %v772
        %836 = vst [vmem:[#allocation2 + $0x60] sm:$0xff] %v775
        %837 = vst [vmem:[#allocation2 + $0x68] sm:$0xff] %v777
        %838 = vst [vmem:[#allocation2 + $0x70] sm:$0xff] %v780
        %839 = vst [vmem:[#allocation2 + $0x78] sm:$0xff] %v782
        %840 = vst [vmem:[#allocation2 + $0x80] sm:$0xff] %v785
        %841 = vst [vmem:[#allocation2 + $0x88] sm:$0xff] %v787
        %842 = vst [vmem:[#allocation2 + $0x90] sm:$0xff] %v790
        %843 = vst [vmem:[#allocation2 + $0x98] sm:$0xff] %v792
        %844 = vst [vmem:[#allocation2 + $0xa0] sm:$0xff] %v795
        %845 = vst [vmem:[#allocation2 + $0xa8] sm:$0xff] %v797
        %846 = vst [vmem:[#allocation2 + $0xb0] sm:$0xff] %v800
        %847 = vst [vmem:[#allocation2 + $0xb8] sm:$0xff] %v802
        %848 = vst [vmem:[#allocation2 + $0xc0] sm:$0xff] %v805
        %849 = vst [vmem:[#allocation2 + $0xc8] sm:$0xff] %v807
        %850 = vst [vmem:[#allocation2 + $0xd0] sm:$0xff] %v810
        %851 = vst [vmem:[#allocation2 + $0xd8] sm:$0xff] %v812
        %852 = vst [vmem:[#allocation2 + $0xe0] sm:$0xff] %v815
        %853 = vst [vmem:[#allocation2 + $0xe8] sm:$0xff] %v817
        %854 = vst [vmem:[#allocation2 + $0xf0] sm:$0xff] %v820
        %855 = vst [vmem:[#allocation2 + $0xf8] sm:$0xff] %v822
        %v856 = vld [vmem:[#allocation9] sm:$0xff]
        %v857 = vld [vmem:[#allocation9 + $0x8] sm:$0xff]
        %v858 = vld [vmem:[#allocation9 + $0x10] sm:$0xff]
        %v859 = vld [vmem:[#allocation9 + $0x18] sm:$0xff]
        %v860 = vld [vmem:[#allocation9 + $0x20] sm:$0xff]
        %v861 = vld [vmem:[#allocation9 + $0x28] sm:$0xff]
        %v862 = vld [vmem:[#allocation9 + $0x30] sm:$0xff]
        %v863 = vld [vmem:[#allocation9 + $0x38] sm:$0xff]
        %v864 = vld [vmem:[#allocation9 + $0x40] sm:$0xff]
        %v865 = vld [vmem:[#allocation9 + $0x48] sm:$0xff]
        %v866 = vld [vmem:[#allocation9 + $0x50] sm:$0xff]
        %v867 = vld [vmem:[#allocation9 + $0x58] sm:$0xff]
        %v868 = vld [vmem:[#allocation9 + $0x60] sm:$0xff]
        %v869 = vld [vmem:[#allocation9 + $0x68] sm:$0xff]
        %v870 = vld [vmem:[#allocation9 + $0x70] sm:$0xff]
        %v871 = vld [vmem:[#allocation9 + $0x78] sm:$0xff]
        %v872 = vld [vmem:[#allocation9 + $0x80] sm:$0xff]
        %v873 = vld [vmem:[#allocation9 + $0x88] sm:$0xff]
        %v874 = vld [vmem:[#allocation9 + $0x90] sm:$0xff]
        %v875 = vld [vmem:[#allocation9 + $0x98] sm:$0xff]
        %v876 = vld [vmem:[#allocation9 + $0xa0] sm:$0xff]
        %v877 = vld [vmem:[#allocation9 + $0xa8] sm:$0xff]
        %v878 = vld [vmem:[#allocation9 + $0xb0] sm:$0xff]
        %v879 = vld [vmem:[#allocation9 + $0xb8] sm:$0xff]
        %v880 = vld [vmem:[#allocation9 + $0xc0] sm:$0xff]
        %v881 = vld [vmem:[#allocation9 + $0xc8] sm:$0xff]
        %v882 = vld [vmem:[#allocation9 + $0xd0] sm:$0xff]
        %v883 = vld [vmem:[#allocation9 + $0xd8] sm:$0xff]
        %v884 = vld [vmem:[#allocation9 + $0xe0] sm:$0xff]
        %v885 = vld [vmem:[#allocation9 + $0xe8] sm:$0xff]
        %v886 = vld [vmem:[#allocation9 + $0xf0] sm:$0xff]
        %v887 = vld [vmem:[#allocation9 + $0xf8] sm:$0xff]
        %v888 = vadd.f32 %v856, %v745
        %v889 = vadd.f32 %v857, %v747
        %v890 = vadd.f32 %v858, %v750
        %v891 = vadd.f32 %v859, %v752
        %v892 = vadd.f32 %v860, %v755
        %v893 = vadd.f32 %v861, %v757
        %v894 = vadd.f32 %v862, %v760
        %v895 = vadd.f32 %v863, %v762
        %v896 = vadd.f32 %v864, %v765
        %v897 = vadd.f32 %v865, %v767
        %v898 = vadd.f32 %v866, %v770
        %v899 = vadd.f32 %v867, %v772
        %v900 = vadd.f32 %v868, %v775
        %v901 = vadd.f32 %v869, %v777
        %v902 = vadd.f32 %v870, %v780
        %v903 = vadd.f32 %v871, %v782
        %v904 = vadd.f32 %v872, %v785
        %v905 = vadd.f32 %v873, %v787
        %v906 = vadd.f32 %v874, %v790
        %v907 = vadd.f32 %v875, %v792
        %v908 = vadd.f32 %v876, %v795
        %v909 = vadd.f32 %v877, %v797
        %v910 = vadd.f32 %v878, %v800
        %v911 = vadd.f32 %v879, %v802
        %v912 = vadd.f32 %v880, %v805
        %v913 = vadd.f32 %v881, %v807
        %v914 = vadd.f32 %v882, %v810
        %v915 = vadd.f32 %v883, %v812
        %v916 = vadd.f32 %v884, %v815
        %v917 = vadd.f32 %v885, %v817
        %v918 = vadd.f32 %v886, %v820
        %v919 = vadd.f32 %v887, %v822
        %920 = vst [vmem:[#allocation9] sm:$0xff] %v888
        %921 = vst [vmem:[#allocation9 + $0x8] sm:$0xff] %v889
        %922 = vst [vmem:[#allocation9 + $0x10] sm:$0xff] %v890
        %923 = vst [vmem:[#allocation9 + $0x18] sm:$0xff] %v891
        %924 = vst [vmem:[#allocation9 + $0x20] sm:$0xff] %v892
        %925 = vst [vmem:[#allocation9 + $0x28] sm:$0xff] %v893
        %926 = vst [vmem:[#allocation9 + $0x30] sm:$0xff] %v894
        %927 = vst [vmem:[#allocation9 + $0x38] sm:$0xff] %v895
        %928 = vst [vmem:[#allocation9 + $0x40] sm:$0xff] %v896
        %929 = vst [vmem:[#allocation9 + $0x48] sm:$0xff] %v897
        %930 = vst [vmem:[#allocation9 + $0x50] sm:$0xff] %v898
        %931 = vst [vmem:[#allocation9 + $0x58] sm:$0xff] %v899
        %932 = vst [vmem:[#allocation9 + $0x60] sm:$0xff] %v900
        %933 = vst [vmem:[#allocation9 + $0x68] sm:$0xff] %v901
        %934 = vst [vmem:[#allocation9 + $0x70] sm:$0xff] %v902
        %935 = vst [vmem:[#allocation9 + $0x78] sm:$0xff] %v903
        %936 = vst [vmem:[#allocation9 + $0x80] sm:$0xff] %v904
        %937 = vst [vmem:[#allocation9 + $0x88] sm:$0xff] %v905
        %938 = vst [vmem:[#allocation9 + $0x90] sm:$0xff] %v906
        %939 = vst [vmem:[#allocation9 + $0x98] sm:$0xff] %v907
        %940 = vst [vmem:[#allocation9 + $0xa0] sm:$0xff] %v908
        %941 = vst [vmem:[#allocation9 + $0xa8] sm:$0xff] %v909
        %942 = vst [vmem:[#allocation9 + $0xb0] sm:$0xff] %v910
        %943 = vst [vmem:[#allocation9 + $0xb8] sm:$0xff] %v911
        %944 = vst [vmem:[#allocation9 + $0xc0] sm:$0xff] %v912
        %945 = vst [vmem:[#allocation9 + $0xc8] sm:$0xff] %v913
        %946 = vst [vmem:[#allocation9 + $0xd0] sm:$0xff] %v914
        %947 = vst [vmem:[#allocation9 + $0xd8] sm:$0xff] %v915
        %948 = vst [vmem:[#allocation9 + $0xe0] sm:$0xff] %v916
        %949 = vst [vmem:[#allocation9 + $0xe8] sm:$0xff] %v917
        %950 = vst [vmem:[#allocation9 + $0xf0] sm:$0xff] %v918
        %951 = vst [vmem:[#allocation9 + $0xf8] sm:$0xff] %v919
        %p952 = scmp.eq.s32.totalorder %s17, 2
        // Predicated region
        $region49: #{tpu_custom_call.1} parent=31 // pred_check
          %p953 = pneg %p952
        $region50: #{tpu_custom_call.1} parent=31 // pred_check_branch
          %955 = sbr.rel (%p953) target = $region52
        $region51: #{tpu_custom_call.1} parent=31 // pred_region
          %v956 = vld [vmem:[#allocation9] sm:$0xff]
          %v957 = vld [vmem:[#allocation9 + $0x8] sm:$0xff]
          %v958 = vld [vmem:[#allocation9 + $0x10] sm:$0xff]
          %v959 = vld [vmem:[#allocation9 + $0x18] sm:$0xff]
          %v960 = vld [vmem:[#allocation9 + $0x20] sm:$0xff]
          %v961 = vld [vmem:[#allocation9 + $0x28] sm:$0xff]
          %v962 = vld [vmem:[#allocation9 + $0x30] sm:$0xff]
          %v963 = vld [vmem:[#allocation9 + $0x38] sm:$0xff]
          %v964 = vld [vmem:[#allocation9 + $0x40] sm:$0xff]
          %v965 = vld [vmem:[#allocation9 + $0x48] sm:$0xff]
          %v966 = vld [vmem:[#allocation9 + $0x50] sm:$0xff]
          %v967 = vld [vmem:[#allocation9 + $0x58] sm:$0xff]
          %v968 = vld [vmem:[#allocation9 + $0x60] sm:$0xff]
          %v969 = vld [vmem:[#allocation9 + $0x68] sm:$0xff]
          %v970 = vld [vmem:[#allocation9 + $0x70] sm:$0xff]
          %v971 = vld [vmem:[#allocation9 + $0x78] sm:$0xff]
          %v972 = vld [vmem:[#allocation9 + $0x80] sm:$0xff]
          %v973 = vld [vmem:[#allocation9 + $0x88] sm:$0xff]
          %v974 = vld [vmem:[#allocation9 + $0x90] sm:$0xff]
          %v975 = vld [vmem:[#allocation9 + $0x98] sm:$0xff]
          %v976 = vld [vmem:[#allocation9 + $0xa0] sm:$0xff]
          %v977 = vld [vmem:[#allocation9 + $0xa8] sm:$0xff]
          %v978 = vld [vmem:[#allocation9 + $0xb0] sm:$0xff]
          %v979 = vld [vmem:[#allocation9 + $0xb8] sm:$0xff]
          %v980 = vld [vmem:[#allocation9 + $0xc0] sm:$0xff]
          %v981 = vld [vmem:[#allocation9 + $0xc8] sm:$0xff]
          %v982 = vld [vmem:[#allocation9 + $0xd0] sm:$0xff]
          %v983 = vld [vmem:[#allocation9 + $0xd8] sm:$0xff]
          %v984 = vld [vmem:[#allocation9 + $0xe0] sm:$0xff]
          %v985 = vld [vmem:[#allocation9 + $0xe8] sm:$0xff]
          %v986 = vld [vmem:[#allocation9 + $0xf0] sm:$0xff]
          %v987 = vld [vmem:[#allocation9 + $0xf8] sm:$0xff]
          %v988 = vmul.f32 %v956, 0.25
          %v989 = vmul.f32 %v957, 0.25
          %v990 = vmul.f32 %v958, 0.25
          %v991 = vmul.f32 %v959, 0.25
          %v992 = vmul.f32 %v960, 0.25
          %v993 = vmul.f32 %v961, 0.25
          %v994 = vmul.f32 %v962, 0.25
          %v995 = vmul.f32 %v963, 0.25
          %v996 = vmul.f32 %v964, 0.25
          %v997 = vmul.f32 %v965, 0.25
          %v998 = vmul.f32 %v966, 0.25
          %v999 = vmul.f32 %v967, 0.25
          %v1000 = vmul.f32 %v968, 0.25
          %v1001 = vmul.f32 %v969, 0.25
          %v1002 = vmul.f32 %v970, 0.25
          %v1003 = vmul.f32 %v971, 0.25
          %v1004 = vmul.f32 %v972, 0.25
          %v1005 = vmul.f32 %v973, 0.25
          %v1006 = vmul.f32 %v974, 0.25
          %v1007 = vmul.f32 %v975, 0.25
          %v1008 = vmul.f32 %v976, 0.25
          %v1009 = vmul.f32 %v977, 0.25
          %v1010 = vmul.f32 %v978, 0.25
          %v1011 = vmul.f32 %v979, 0.25
          %v1012 = vmul.f32 %v980, 0.25
          %v1013 = vmul.f32 %v981, 0.25
          %v1014 = vmul.f32 %v982, 0.25
          %v1015 = vmul.f32 %v983, 0.25
          %v1016 = vmul.f32 %v984, 0.25
          %v1017 = vmul.f32 %v985, 0.25
          %v1018 = vmul.f32 %v986, 0.25
          %v1019 = vmul.f32 %v987, 0.25
          %1020 = vst [vmem:[#allocation9] sm:$0xff] %v988
          %1021 = vst [vmem:[#allocation9 + $0x8] sm:$0xff] %v989
          %1022 = vst [vmem:[#allocation9 + $0x10] sm:$0xff] %v990
          %1023 = vst [vmem:[#allocation9 + $0x18] sm:$0xff] %v991
          %1024 = vst [vmem:[#allocation9 + $0x20] sm:$0xff] %v992
          %1025 = vst [vmem:[#allocation9 + $0x28] sm:$0xff] %v993
          %1026 = vst [vmem:[#allocation9 + $0x30] sm:$0xff] %v994
          %1027 = vst [vmem:[#allocation9 + $0x38] sm:$0xff] %v995
          %1028 = vst [vmem:[#allocation9 + $0x40] sm:$0xff] %v996
          %1029 = vst [vmem:[#allocation9 + $0x48] sm:$0xff] %v997
          %1030 = vst [vmem:[#allocation9 + $0x50] sm:$0xff] %v998
          %1031 = vst [vmem:[#allocation9 + $0x58] sm:$0xff] %v999
          %1032 = vst [vmem:[#allocation9 + $0x60] sm:$0xff] %v1000
          %1033 = vst [vmem:[#allocation9 + $0x68] sm:$0xff] %v1001
          %1034 = vst [vmem:[#allocation9 + $0x70] sm:$0xff] %v1002
          %1035 = vst [vmem:[#allocation9 + $0x78] sm:$0xff] %v1003
          %1036 = vst [vmem:[#allocation9 + $0x80] sm:$0xff] %v1004
          %1037 = vst [vmem:[#allocation9 + $0x88] sm:$0xff] %v1005
          %1038 = vst [vmem:[#allocation9 + $0x90] sm:$0xff] %v1006
          %1039 = vst [vmem:[#allocation9 + $0x98] sm:$0xff] %v1007
          %1040 = vst [vmem:[#allocation9 + $0xa0] sm:$0xff] %v1008
          %1041 = vst [vmem:[#allocation9 + $0xa8] sm:$0xff] %v1009
          %1042 = vst [vmem:[#allocation9 + $0xb0] sm:$0xff] %v1010
          %1043 = vst [vmem:[#allocation9 + $0xb8] sm:$0xff] %v1011
          %1044 = vst [vmem:[#allocation9 + $0xc0] sm:$0xff] %v1012
          %1045 = vst [vmem:[#allocation9 + $0xc8] sm:$0xff] %v1013
          %1046 = vst [vmem:[#allocation9 + $0xd0] sm:$0xff] %v1014
          %1047 = vst [vmem:[#allocation9 + $0xd8] sm:$0xff] %v1015
          %1048 = vst [vmem:[#allocation9 + $0xe0] sm:$0xff] %v1016
          %1049 = vst [vmem:[#allocation9 + $0xe8] sm:$0xff] %v1017
          %1050 = vst [vmem:[#allocation9 + $0xf0] sm:$0xff] %v1018
          %1051 = vst [vmem:[#allocation9 + $0xf8] sm:$0xff] %v1019
        $region52: #{tpu_custom_call.1} parent=31 // pred_fallthru
          _
        // Predicated region
        $region53: #{tpu_custom_call.1} parent=31 // pred_check
          %p1052 = pneg %p98
        $region54: #{tpu_custom_call.1} parent=31 // pred_check_branch
          %1054 = sbr.rel (%p1052) target = $region56
        $region55: #{tpu_custom_call.1} parent=31 // pred_region
          %1056 = vsyncadd [#allocation5], 0
          %s1057 = sshll.u32 [#allocation9], 4
          %s1058 = int_to_ptr.vmem [resolvable:$true] %s1057
          %s1059 = sshll.u32 %s3, 4
          %s1060 = int_to_ptr.hbm [resolvable:$true] %s1059
          %1065 = dma.vmem_to_hbm [thread:$0]  %s1058, 4096, %s1060, [#allocation5], 128, 128, 8
        $region56: #{tpu_custom_call.1} parent=31 // pred_fallthru
          _
        // Predicated region
        $region57: #{tpu_custom_call.1} parent=31 // pred_check
          %p1066 = pneg %p98
        $region58: #{tpu_custom_call.1} parent=31 // pred_check_branch
          %1068 = sbr.rel (%p1066) target = $region60
        $region59: #{tpu_custom_call.1} parent=31 // pred_region
          %1070 = dma.done [#allocation5], 4096
        $region60: #{tpu_custom_call.1} parent=31 // pred_fallthru
          _
      $region32: #{tpu_custom_call.1} parent=5 // pred_fallthru
        _
      %p1071 = scmp.le.s32.totalorder 2, %s12
      // Predicated region
      $region61: #{tpu_custom_call.1} parent=5 // pred_check
        %p1072 = pneg %p1071
      $region62: #{tpu_custom_call.1} parent=5 // pred_check_branch
        %1074 = sbr.rel (%p1072) target = $region64
      $region63: #{tpu_custom_call.1} parent=5 // pred_region
        %s1075 = ssub.s32 %s12, 2
      $region64: #{tpu_custom_call.1} parent=5 // pred_fallthru
        _
    $region6: #{tpu_custom_call.1} parent=1 // loop_footer
      %s16 = sadd.s32 1, %s12
    $region7: #{tpu_custom_call.1} parent=1 // loop_footer_branch
      %11 = sbr.rel target = $region3
    $region8: #{tpu_custom_call.1} parent=1 // loop_exit
      _
    %1076 = vsyncpa [#allocation4], 1
    %s1077 = scalar_lea.sflag [#allocation4], 1
    %1078 = vsyncpa %s1077, 1
    %1079 = vsyncpa [#allocation7], 1
    %1080 = vsyncpa [#allocation5], 1
    %s1081 = scalar_lea.sflag [#allocation5], 1
    %1082 = vsyncpa %s1081, 1

// kernel: tpu_custom_call.1
$region0: #{tpu_custom_call.1}
  #allocation0 [shape = 'u32[]', space=smem, size = 0x4, offset = 0x4, fixed_abs, tag = 'smem constant byte address 0x4 - core index']
  #allocation1 [shape = 'u32[72,128]{1,0:T(1,128)}', space=vmem, size = 0x9000, scoped, tag = 'internal scratch']
  #allocation2 [shape = 'f32[256,128]{1,0:T(8,128)}', space=vmem, size = 0x20000, scoped, tag = 'scratch operand']
  %s0 = inlined_call_operand.hbm [shape: bf16[256,256], index: 0, kind: input, shape index: {}]
  %s1 = inlined_call_operand.hbm [shape: f32[256,128], index: 1, kind: input, shape index: {}]
  %s2 = inlined_call_operand.hbm [shape: f32[3,256,128], index: 2, kind: input, shape index: {}]
  %s3 = inlined_call_operand.hbm [shape: f32[256,128], index: 3, kind: output, shape index: {}]
  %s4 = sld [smem:[#allocation0]]
  $region65: #{tpu_custom_call.1} parent=0
    _
  %s6 = ssub.s32 1, %s4
  %s7 = scalar_select 0, %s6, %s4
  $region1: #{tpu_custom_call.1} parent=0
    #allocation3 [shape = 'u8[131072]{0}', space=vmem, size = 0x20000, scoped, tag = 'input window, operand 0, single buffered']
    #allocation4 [shape = 's32[2]{0}', space=sflag, size = 0x8, scoped, tag = 'scoped memory for tpu_custom_call.1']
    #allocation5 [shape = 's32[2]{0}', space=sflag, size = 0x8, scoped, tag = 'scoped memory for tpu_custom_call.1']
    #allocation6 [shape = 'u8[131072]{0}', space=vmem, size = 0x20000, scoped, tag = 'input window, operand 1, single buffered']
    #allocation7 [shape = 's32[1]{0}', space=sflag, size = 0x4, scoped, tag = 'scoped memory for tpu_custom_call.1']
    #allocation8 [shape = 'u8[262144]{0}', space=vmem, size = 0x40000, scoped, tag = 'input window, operand 2']
    #allocation9 [shape = 'u8[131072]{0}', space=vmem, size = 0x20000, scoped, tag = 'output window, operand 0, single buffered']
    %8 = vsyncpa [#allocation4], 0
    %9 = vsyncpa [#allocation7], 0
    %10 = vsyncpa [#allocation5], 0
    loop: start=0, step=1, limit=5
    $region2: #{tpu_custom_call.1} parent=1 // loop_pre_header
      _
    $region3: #{tpu_custom_call.1} parent=1 // loop_header
      %s12 = sphi 0, %s16
      %p13 = scmp.ge.s32.totalorder %s12, 5
      %s20 = sphi 0, %s20
      %s22 = sphi 0, %s20
      %s23 = sphi 0, %s22
      %s37 = sphi 0, %s23
      %s41 = sphi 0, %s41
      %s43 = sphi 0, %s41
      %s44 = sphi 0, %s43
      %s58 = sphi 0, %s44
      %s64 = sphi 0, %s66
      %s67 = sphi 0, %s64
      %s68 = sphi 0, %s67
      %s84 = sphi 0, %s68
      %s88 = sphi 0, %s88
      %s90 = sphi 0, %s88
      %s91 = sphi 0, %s90
      %s105 = sphi 0, %s91
    $region4: #{tpu_custom_call.1} parent=1 // loop_header_branch
      %15 = sbr.rel (%p13) target = $region8
    $region5: #{tpu_custom_call.1} parent=1 // loop_body
      %s17 = ssub.s32 %s12, 1
      %s18 = ssub.s32 %s12, 2
      %s19 = sadd.s32 %s12, 1
      %s21 = sadd.s32 %s20, 1
      %p24 = scmp.eq.s32.totalorder %s12, 2
      %p25 = scmp.ne.s32.totalorder %s20, %s22
      %p26 = scmp.eq.s32.totalorder %s12, 0
      %p27 = por %p25, %p26
      %p28 = scmp.ne.s32.totalorder %s20, %s22
      %p29 = scmp.eq.s32.totalorder %s17, 2
      %p30 = por %p28, %p29
      %p31 = scmp.ne.s32.totalorder %s22, %s23
      %p32 = scmp.eq.s32.totalorder %s17, 0
      %p33 = por %p31, %p32
      %p34 = scmp.ne.s32.totalorder %s22, %s23
      %p35 = scmp.eq.s32.totalorder %s18, 2
      %p36 = por %p34, %p35
      %p38 = scmp.ne.s32.totalorder %s23, %s37
      %p39 = scmp.eq.s32.totalorder %s18, 0
      %p40 = por %p38, %p39
      %s42 = sadd.s32 %s41, 1
      %p45 = scmp.eq.s32.totalorder %s12, 2
      %p46 = scmp.ne.s32.totalorder %s41, %s43
      %p47 = scmp.eq.s32.totalorder %s12, 0
      %p48 = por %p46, %p47
      %p49 = scmp.ne.s32.totalorder %s41, %s43
      %p50 = scmp.eq.s32.totalorder %s17, 2
      %p51 = por %p49, %p50
      %p52 = scmp.ne.s32.totalorder %s43, %s44
      %p53 = scmp.eq.s32.totalorder %s17, 0
      %p54 = por %p52, %p53
      %p55 = scmp.ne.s32.totalorder %s43, %s44
      %p56 = scmp.eq.s32.totalorder %s18, 2
      %p57 = por %p55, %p56
      %p59 = scmp.ne.s32.totalorder %s44, %s58
      %p60 = scmp.eq.s32.totalorder %s18, 0
      %p61 = por %p59, %p60
      %s62 = ssub.s32 %s12, %s19
      %p63 = scmp.eq.s32.totalorder %s62, 0
      %s65 = sadd.s32 %s64, 1
      %s66 = scalar_select %p63, %s64, %s65
      %p69 = pneg %p63
      %p70 = scmp.eq.s32.totalorder %s12, 2
      %p71 = por %p69, %p70
      %p72 = scmp.ne.s32.totalorder %s64, %s67
      %p73 = scmp.eq.s32.totalorder %s12, 0
      %p74 = por %p72, %p73
      %p75 = scmp.ne.s32.totalorder %s64, %s67
      %p76 = scmp.eq.s32.totalorder %s17, 2
      %p77 = por %p75, %p76
      %p78 = scmp.ne.s32.totalorder %s67, %s68
      %p79 = scmp.eq.s32.totalorder %s17, 0
      %p80 = por %p78, %p79
      %p81 = scmp.ne.s32.totalorder %s67, %s68
      %p82 = scmp.eq.s32.totalorder %s18, 2
      %p83 = por %p81, %p82
      %p85 = scmp.ne.s32.totalorder %s68, %s84
      %p86 = scmp.eq.s32.totalorder %s18, 0
      %p87 = por %p85, %p86
      %s89 = sadd.s32 %s88, 1
      %p92 = scmp.eq.s32.totalorder %s12, 2
      %p93 = scmp.ne.s32.totalorder %s88, %s90
      %p94 = scmp.eq.s32.totalorder %s12, 0
      %p95 = por %p93, %p94
      %p96 = scmp.ne.s32.totalorder %s88, %s90
      %p97 = scmp.eq.s32.totalorder %s17, 2
      %p98 = por %p96, %p97
      %p99 = scmp.ne.s32.totalorder %s90, %s91
      %p100 = scmp.eq.s32.totalorder %s17, 0
      %p101 = por %p99, %p100
      %p102 = scmp.ne.s32.totalorder %s90, %s91
      %p103 = scmp.eq.s32.totalorder %s18, 2
      %p104 = por %p102, %p103
      %p106 = scmp.ne.s32.totalorder %s91, %s105
      %p107 = scmp.eq.s32.totalorder %s18, 0
      %p108 = por %p106, %p107
      %p109 = scmp.le.s32.totalorder 1, %s12
      %p110 = scmp.lt.s32.totalorder %s12, 4
      %p111 = pnand %p109, %p110
      %p112 = pneg %p111
      // Predicated region
      $region9: #{tpu_custom_call.1} parent=5 // pred_check
        _
      $region10: #{tpu_custom_call.1} parent=5 // pred_check_branch
        %114 = sbr.rel (%p111) target = $region12
      $region11: #{tpu_custom_call.1} parent=5 // pred_region
        %s115 = ssub.s32 %s12, 1
        // Predicated region
        $region13: #{tpu_custom_call.1} parent=11 // pred_check
          %p116 = pneg %p33
        $region14: #{tpu_custom_call.1} parent=11 // pred_check_branch
          %118 = sbr.rel (%p116) target = $region16
        $region15: #{tpu_custom_call.1} parent=11 // pred_region
          %120 = vsyncadd [#allocation4], 0
          %s121 = sshll.u32 %s0, 4
          %s122 = int_to_ptr.hbm [resolvable:$true] %s121
          %s123 = sshll.u32 [#allocation3], 4
          %s124 = int_to_ptr.vmem [resolvable:$true] %s123
          %129 = dma.hbm_to_vmem [thread:$0]  %s122, 4096, %s124, [#allocation4], 128, 128, 8
        $region16: #{tpu_custom_call.1} parent=11 // pred_fallthru
          _
        // Predicated region
        $region17: #{tpu_custom_call.1} parent=11 // pred_check
          %p130 = pneg %p54
        $region18: #{tpu_custom_call.1} parent=11 // pred_check_branch
          %132 = sbr.rel (%p130) target = $region20
        $region19: #{tpu_custom_call.1} parent=11 // pred_region
          %134 = vsyncadd [#allocation7], 0
          %s135 = sshll.u32 %s1, 4
          %s136 = int_to_ptr.hbm [resolvable:$true] %s135
          %s137 = sshll.u32 [#allocation6], 4
          %s138 = int_to_ptr.vmem [resolvable:$true] %s137
          %143 = dma.hbm_to_vmem [thread:$0]  %s136, 4096, %s138, [#allocation7], 128, 128, 8
        $region20: #{tpu_custom_call.1} parent=11 // pred_fallthru
          _
      $region12: #{tpu_custom_call.1} parent=5 // pred_fallthru
        _
      %p144 = scmp.lt.s32.totalorder %s12, 3
      // Predicated region
      $region21: #{tpu_custom_call.1} parent=5 // pred_check
        %p145 = pneg %p144
      $region22: #{tpu_custom_call.1} parent=5 // pred_check_branch
        %147 = sbr.rel (%p145) target = $region24
      $region23: #{tpu_custom_call.1} parent=5 // pred_region
        // Predicated region
        $region25: #{tpu_custom_call.1} parent=23 // pred_check
          %p148 = pneg %p74
        $region26: #{tpu_custom_call.1} parent=23 // pred_check_branch
          %150 = sbr.rel (%p148) target = $region28
        $region27: #{tpu_custom_call.1} parent=23 // pred_region
          %s151 = sand.u32 %s12, 1
          %s152 = scalar_lea.sflag [#allocation4], %s151
          %s153 = sand.u32 %s64, 1
          %s154 = smul.addr %s153, 256
          %s155 = scalar_lea.vmem [#allocation8], %s154
          %157 = vsyncadd %s152, 0
          %s158 = smul.addr %s12, 32
          %s159 = smul.addr %s158, 8
          %s160 = scalar_lea.hbm %s2, %s159
          %s161 = sshll.u32 %s160, 4
          %s162 = int_to_ptr.hbm [resolvable:$true] %s161
          %s163 = sshll.u32 %s155, 4
          %s164 = int_to_ptr.vmem [resolvable:$true] %s163
          %169 = dma.hbm_to_vmem [thread:$0]  %s162, 4096, %s164, %s152, 128, 128, 8
        $region28: #{tpu_custom_call.1} parent=23 // pred_fallthru
          _
      $region24: #{tpu_custom_call.1} parent=5 // pred_fallthru
        _
      %p170 = scmp.le.s32.totalorder 1, %s12
      %p171 = scmp.lt.s32.totalorder %s12, 4
      %p172 = pnand %p170, %p171
      %p173 = pneg %p172
      // Predicated region
      $region29: #{tpu_custom_call.1} parent=5 // pred_check
        _
      $region30: #{tpu_custom_call.1} parent=5 // pred_check_branch
        %175 = sbr.rel (%p172) target = $region32
      $region31: #{tpu_custom_call.1} parent=5 // pred_region
        %s176 = ssub.s32 %s12, 1
        // Predicated region
        $region33: #{tpu_custom_call.1} parent=31 // pred_check
          %p177 = pneg %p33
        $region34: #{tpu_custom_call.1} parent=31 // pred_check_branch
          %179 = sbr.rel (%p177) target = $region36
        $region35: #{tpu_custom_call.1} parent=31 // pred_region
          %181 = dma.done [#allocation4], 4096
        $region36: #{tpu_custom_call.1} parent=31 // pred_fallthru
          _
        // Predicated region
        $region37: #{tpu_custom_call.1} parent=31 // pred_check
          %p182 = pneg %p54
        $region38: #{tpu_custom_call.1} parent=31 // pred_check_branch
          %184 = sbr.rel (%p182) target = $region40
        $region39: #{tpu_custom_call.1} parent=31 // pred_region
          %186 = dma.done [#allocation7], 4096
        $region40: #{tpu_custom_call.1} parent=31 // pred_fallthru
          _
        %s187 = sand.u32 %s17, 1
        %s188 = scalar_lea.sflag [#allocation4], %s187
        %s189 = sand.u32 %s67, 1
        %s190 = smul.addr %s189, 256
        %s191 = scalar_lea.vmem [#allocation8], %s190
        // Predicated region
        $region41: #{tpu_custom_call.1} parent=31 // pred_check
          %p192 = pneg %p80
        $region42: #{tpu_custom_call.1} parent=31 // pred_check_branch
          %194 = sbr.rel (%p192) target = $region44
        $region43: #{tpu_custom_call.1} parent=31 // pred_region
          %196 = dma.done %s188, 4096
        $region44: #{tpu_custom_call.1} parent=31 // pred_fallthru
          _
        %p197 = pneg %p33
        %p198 = pneg %p30
        %p199 = pneg %p54
        %p200 = pneg %p51
        %s201 = sand.u32 %s17, 1
        %s202 = scalar_lea.sflag [#allocation4], %s201
        %s203 = sand.u32 %s67, 1
        %s204 = smul.addr %s203, 256
        %s205 = scalar_lea.vmem [#allocation8], %s204
        %p206 = pneg %p80
        %p207 = pneg %p77
        %p208 = pneg %p101
        %p209 = pneg %p98
        %p210 = scmp.eq.s32.totalorder %s17, 0
        // Predicated region
        $region45: #{tpu_custom_call.1} parent=31 // pred_check
          %p211 = pneg %p210
        $region46: #{tpu_custom_call.1} parent=31 // pred_check_branch
          %213 = sbr.rel (%p211) target = $region48
        $region47: #{tpu_custom_call.1} parent=31 // pred_region
          %v214 = vld [vmem:[#allocation6] sm:$0xff]
          %v215 = vld [vmem:[#allocation6 + $0x8] sm:$0xff]
          %v216 = vld [vmem:[#allocation6 + $0x10] sm:$0xff]
          %v217 = vld [vmem:[#allocation6 + $0x18] sm:$0xff]
          %v218 = vld [vmem:[#allocation6 + $0x20] sm:$0xff]
          %v219 = vld [vmem:[#allocation6 + $0x28] sm:$0xff]
          %v220 = vld [vmem:[#allocation6 + $0x30] sm:$0xff]
          %v221 = vld [vmem:[#allocation6 + $0x38] sm:$0xff]
          %v222 = vld [vmem:[#allocation6 + $0x40] sm:$0xff]
          %v223 = vld [vmem:[#allocation6 + $0x48] sm:$0xff]
          %v224 = vld [vmem:[#allocation6 + $0x50] sm:$0xff]
          %v225 = vld [vmem:[#allocation6 + $0x58] sm:$0xff]
          %v226 = vld [vmem:[#allocation6 + $0x60] sm:$0xff]
          %v227 = vld [vmem:[#allocation6 + $0x68] sm:$0xff]
          %v228 = vld [vmem:[#allocation6 + $0x70] sm:$0xff]
          %v229 = vld [vmem:[#allocation6 + $0x78] sm:$0xff]
          %v230 = vld [vmem:[#allocation6 + $0x80] sm:$0xff]
          %v231 = vld [vmem:[#allocation6 + $0x88] sm:$0xff]
          %v232 = vld [vmem:[#allocation6 + $0x90] sm:$0xff]
          %v233 = vld [vmem:[#allocation6 + $0x98] sm:$0xff]
          %v234 = vld [vmem:[#allocation6 + $0xa0] sm:$0xff]
          %v235 = vld [vmem:[#allocation6 + $0xa8] sm:$0xff]
          %v236 = vld [vmem:[#allocation6 + $0xb0] sm:$0xff]
          %v237 = vld [vmem:[#allocation6 + $0xb8] sm:$0xff]
          %v238 = vld [vmem:[#allocation6 + $0xc0] sm:$0xff]
          %v239 = vld [vmem:[#allocation6 + $0xc8] sm:$0xff]
          %v240 = vld [vmem:[#allocation6 + $0xd0] sm:$0xff]
          %v241 = vld [vmem:[#allocation6 + $0xd8] sm:$0xff]
          %v242 = vld [vmem:[#allocation6 + $0xe0] sm:$0xff]
          %v243 = vld [vmem:[#allocation6 + $0xe8] sm:$0xff]
          %v244 = vld [vmem:[#allocation6 + $0xf0] sm:$0xff]
          %v245 = vld [vmem:[#allocation6 + $0xf8] sm:$0xff]
          %246 = vst [vmem:[#allocation2] sm:$0xff] %v214
          %247 = vst [vmem:[#allocation2 + $0x8] sm:$0xff] %v215
          %248 = vst [vmem:[#allocation2 + $0x10] sm:$0xff] %v216
          %249 = vst [vmem:[#allocation2 + $0x18] sm:$0xff] %v217
          %250 = vst [vmem:[#allocation2 + $0x20] sm:$0xff] %v218
          %251 = vst [vmem:[#allocation2 + $0x28] sm:$0xff] %v219
          %252 = vst [vmem:[#allocation2 + $0x30] sm:$0xff] %v220
          %253 = vst [vmem:[#allocation2 + $0x38] sm:$0xff] %v221
          %254 = vst [vmem:[#allocation2 + $0x40] sm:$0xff] %v222
          %255 = vst [vmem:[#allocation2 + $0x48] sm:$0xff] %v223
          %256 = vst [vmem:[#allocation2 + $0x50] sm:$0xff] %v224
          %257 = vst [vmem:[#allocation2 + $0x58] sm:$0xff] %v225
          %258 = vst [vmem:[#allocation2 + $0x60] sm:$0xff] %v226
          %259 = vst [vmem:[#allocation2 + $0x68] sm:$0xff] %v227
          %260 = vst [vmem:[#allocation2 + $0x70] sm:$0xff] %v228
          %261 = vst [vmem:[#allocation2 + $0x78] sm:$0xff] %v229
          %262 = vst [vmem:[#allocation2 + $0x80] sm:$0xff] %v230
          %263 = vst [vmem:[#allocation2 + $0x88] sm:$0xff] %v231
          %264 = vst [vmem:[#allocation2 + $0x90] sm:$0xff] %v232
          %265 = vst [vmem:[#allocation2 + $0x98] sm:$0xff] %v233
          %266 = vst [vmem:[#allocation2 + $0xa0] sm:$0xff] %v234
          %267 = vst [vmem:[#allocation2 + $0xa8] sm:$0xff] %v235
          %268 = vst [vmem:[#allocation2 + $0xb0] sm:$0xff] %v236
          %269 = vst [vmem:[#allocation2 + $0xb8] sm:$0xff] %v237
          %270 = vst [vmem:[#allocation2 + $0xc0] sm:$0xff] %v238
          %271 = vst [vmem:[#allocation2 + $0xc8] sm:$0xff] %v239
          %272 = vst [vmem:[#allocation2 + $0xd0] sm:$0xff] %v240
          %273 = vst [vmem:[#allocation2 + $0xd8] sm:$0xff] %v241
          %274 = vst [vmem:[#allocation2 + $0xe0] sm:$0xff] %v242
          %275 = vst [vmem:[#allocation2 + $0xe8] sm:$0xff] %v243
          %276 = vst [vmem:[#allocation2 + $0xf0] sm:$0xff] %v244
          %277 = vst [vmem:[#allocation2 + $0xf8] sm:$0xff] %v245
          %v278 = vld [vmem:[#allocation6] sm:$0xff]
          %v279 = vld [vmem:[#allocation6 + $0x8] sm:$0xff]
          %v280 = vld [vmem:[#allocation6 + $0x10] sm:$0xff]
          %v281 = vld [vmem:[#allocation6 + $0x18] sm:$0xff]
          %v282 = vld [vmem:[#allocation6 + $0x20] sm:$0xff]
          %v283 = vld [vmem:[#allocation6 + $0x28] sm:$0xff]
          %v284 = vld [vmem:[#allocation6 + $0x30] sm:$0xff]
          %v285 = vld [vmem:[#allocation6 + $0x38] sm:$0xff]
          %v286 = vld [vmem:[#allocation6 + $0x40] sm:$0xff]
          %v287 = vld [vmem:[#allocation6 + $0x48] sm:$0xff]
          %v288 = vld [vmem:[#allocation6 + $0x50] sm:$0xff]
          %v289 = vld [vmem:[#allocation6 + $0x58] sm:$0xff]
          %v290 = vld [vmem:[#allocation6 + $0x60] sm:$0xff]
          %v291 = vld [vmem:[#allocation6 + $0x68] sm:$0xff]
          %v292 = vld [vmem:[#allocation6 + $0x70] sm:$0xff]
          %v293 = vld [vmem:[#allocation6 + $0x78] sm:$0xff]
          %v294 = vld [vmem:[#allocation6 + $0x80] sm:$0xff]
          %v295 = vld [vmem:[#allocation6 + $0x88] sm:$0xff]
          %v296 = vld [vmem:[#allocation6 + $0x90] sm:$0xff]
          %v297 = vld [vmem:[#allocation6 + $0x98] sm:$0xff]
          %v298 = vld [vmem:[#allocation6 + $0xa0] sm:$0xff]
          %v299 = vld [vmem:[#allocation6 + $0xa8] sm:$0xff]
          %v300 = vld [vmem:[#allocation6 + $0xb0] sm:$0xff]
          %v301 = vld [vmem:[#allocation6 + $0xb8] sm:$0xff]
          %v302 = vld [vmem:[#allocation6 + $0xc0] sm:$0xff]
          %v303 = vld [vmem:[#allocation6 + $0xc8] sm:$0xff]
          %v304 = vld [vmem:[#allocation6 + $0xd0] sm:$0xff]
          %v305 = vld [vmem:[#allocation6 + $0xd8] sm:$0xff]
          %v306 = vld [vmem:[#allocation6 + $0xe0] sm:$0xff]
          %v307 = vld [vmem:[#allocation6 + $0xe8] sm:$0xff]
          %v308 = vld [vmem:[#allocation6 + $0xf0] sm:$0xff]
          %v309 = vld [vmem:[#allocation6 + $0xf8] sm:$0xff]
          %310 = vst [vmem:[#allocation9] sm:$0xff] %v278
          %311 = vst [vmem:[#allocation9 + $0x8] sm:$0xff] %v279
          %312 = vst [vmem:[#allocation9 + $0x10] sm:$0xff] %v280
          %313 = vst [vmem:[#allocation9 + $0x18] sm:$0xff] %v281
          %314 = vst [vmem:[#allocation9 + $0x20] sm:$0xff] %v282
          %315 = vst [vmem:[#allocation9 + $0x28] sm:$0xff] %v283
          %316 = vst [vmem:[#allocation9 + $0x30] sm:$0xff] %v284
          %317 = vst [vmem:[#allocation9 + $0x38] sm:$0xff] %v285
          %318 = vst [vmem:[#allocation9 + $0x40] sm:$0xff] %v286
          %319 = vst [vmem:[#allocation9 + $0x48] sm:$0xff] %v287
          %320 = vst [vmem:[#allocation9 + $0x50] sm:$0xff] %v288
          %321 = vst [vmem:[#allocation9 + $0x58] sm:$0xff] %v289
          %322 = vst [vmem:[#allocation9 + $0x60] sm:$0xff] %v290
          %323 = vst [vmem:[#allocation9 + $0x68] sm:$0xff] %v291
          %324 = vst [vmem:[#allocation9 + $0x70] sm:$0xff] %v292
          %325 = vst [vmem:[#allocation9 + $0x78] sm:$0xff] %v293
          %326 = vst [vmem:[#allocation9 + $0x80] sm:$0xff] %v294
          %327 = vst [vmem:[#allocation9 + $0x88] sm:$0xff] %v295
          %328 = vst [vmem:[#allocation9 + $0x90] sm:$0xff] %v296
          %329 = vst [vmem:[#allocation9 + $0x98] sm:$0xff] %v297
          %330 = vst [vmem:[#allocation9 + $0xa0] sm:$0xff] %v298
          %331 = vst [vmem:[#allocation9 + $0xa8] sm:$0xff] %v299
          %332 = vst [vmem:[#allocation9 + $0xb0] sm:$0xff] %v300
          %333 = vst [vmem:[#allocation9 + $0xb8] sm:$0xff] %v301
          %334 = vst [vmem:[#allocation9 + $0xc0] sm:$0xff] %v302
          %335 = vst [vmem:[#allocation9 + $0xc8] sm:$0xff] %v303
          %336 = vst [vmem:[#allocation9 + $0xd0] sm:$0xff] %v304
          %337 = vst [vmem:[#allocation9 + $0xd8] sm:$0xff] %v305
          %338 = vst [vmem:[#allocation9 + $0xe0] sm:$0xff] %v306
          %339 = vst [vmem:[#allocation9 + $0xe8] sm:$0xff] %v307
          %340 = vst [vmem:[#allocation9 + $0xf0] sm:$0xff] %v308
          %341 = vst [vmem:[#allocation9 + $0xf8] sm:$0xff] %v309
        $region48: #{tpu_custom_call.1} parent=31 // pred_fallthru
          _
        %v342 = vld [vmem:[#allocation2] sm:$0xff]
        %v343 = vld [vmem:[#allocation2 + $0x8] sm:$0xff]
        %v344 = vld [vmem:[#allocation2 + $0x10] sm:$0xff]
        %v345 = vld [vmem:[#allocation2 + $0x18] sm:$0xff]
        %v346 = vld [vmem:[#allocation2 + $0x20] sm:$0xff]
        %v347 = vld [vmem:[#allocation2 + $0x28] sm:$0xff]
        %v348 = vld [vmem:[#allocation2 + $0x30] sm:$0xff]
        %v349 = vld [vmem:[#allocation2 + $0x38] sm:$0xff]
        %v350 = vld [vmem:[#allocation2 + $0x40] sm:$0xff]
        %v351 = vld [vmem:[#allocation2 + $0x48] sm:$0xff]
        %v352 = vld [vmem:[#allocation2 + $0x50] sm:$0xff]
        %v353 = vld [vmem:[#allocation2 + $0x58] sm:$0xff]
        %v354 = vld [vmem:[#allocation2 + $0x60] sm:$0xff]
        %v355 = vld [vmem:[#allocation2 + $0x68] sm:$0xff]
        %v356 = vld [vmem:[#allocation2 + $0x70] sm:$0xff]
        %v357 = vld [vmem:[#allocation2 + $0x78] sm:$0xff]
        %v358 = vld [vmem:[#allocation2 + $0x80] sm:$0xff]
        %v359 = vld [vmem:[#allocation2 + $0x88] sm:$0xff]
        %v360 = vld [vmem:[#allocation2 + $0x90] sm:$0xff]
        %v361 = vld [vmem:[#allocation2 + $0x98] sm:$0xff]
        %v362 = vld [vmem:[#allocation2 + $0xa0] sm:$0xff]
        %v363 = vld [vmem:[#allocation2 + $0xa8] sm:$0xff]
        %v364 = vld [vmem:[#allocation2 + $0xb0] sm:$0xff]
        %v365 = vld [vmem:[#allocation2 + $0xb8] sm:$0xff]
        %v366 = vld [vmem:[#allocation2 + $0xc0] sm:$0xff]
        %v367 = vld [vmem:[#allocation2 + $0xc8] sm:$0xff]
        %v368 = vld [vmem:[#allocation2 + $0xd0] sm:$0xff]
        %v369 = vld [vmem:[#allocation2 + $0xd8] sm:$0xff]
        %v370 = vld [vmem:[#allocation2 + $0xe0] sm:$0xff]
        %v371 = vld [vmem:[#allocation2 + $0xe8] sm:$0xff]
        %v372 = vld [vmem:[#allocation2 + $0xf0] sm:$0xff]
        %v373 = vld [vmem:[#allocation2 + $0xf8] sm:$0xff]
        %v374 = vld [vmem:[%s191] sm:$0xff]
        %v375 = vld [vmem:[%s191 + $0x8] sm:$0xff]
        %v376 = vld [vmem:[%s191 + $0x10] sm:$0xff]
        %v377 = vld [vmem:[%s191 + $0x18] sm:$0xff]
        %v378 = vld [vmem:[%s191 + $0x20] sm:$0xff]
        %v379 = vld [vmem:[%s191 + $0x28] sm:$0xff]
        %v380 = vld [vmem:[%s191 + $0x30] sm:$0xff]
        %v381 = vld [vmem:[%s191 + $0x38] sm:$0xff]
        %v382 = vld [vmem:[%s191 + $0x40] sm:$0xff]
        %v383 = vld [vmem:[%s191 + $0x48] sm:$0xff]
        %v384 = vld [vmem:[%s191 + $0x50] sm:$0xff]
        %v385 = vld [vmem:[%s191 + $0x58] sm:$0xff]
        %v386 = vld [vmem:[%s191 + $0x60] sm:$0xff]
        %v387 = vld [vmem:[%s191 + $0x68] sm:$0xff]
        %v388 = vld [vmem:[%s191 + $0x70] sm:$0xff]
        %v389 = vld [vmem:[%s191 + $0x78] sm:$0xff]
        %v390 = vld [vmem:[%s191 + $0x80] sm:$0xff]
        %v391 = vld [vmem:[%s191 + $0x88] sm:$0xff]
        %v392 = vld [vmem:[%s191 + $0x90] sm:$0xff]
        %v393 = vld [vmem:[%s191 + $0x98] sm:$0xff]
        %v394 = vld [vmem:[%s191 + $0xa0] sm:$0xff]
        %v395 = vld [vmem:[%s191 + $0xa8] sm:$0xff]
        %v396 = vld [vmem:[%s191 + $0xb0] sm:$0xff]
        %v397 = vld [vmem:[%s191 + $0xb8] sm:$0xff]
        %v398 = vld [vmem:[%s191 + $0xc0] sm:$0xff]
        %v399 = vld [vmem:[%s191 + $0xc8] sm:$0xff]
        %v400 = vld [vmem:[%s191 + $0xd0] sm:$0xff]
        %v401 = vld [vmem:[%s191 + $0xd8] sm:$0xff]
        %v402 = vld [vmem:[%s191 + $0xe0] sm:$0xff]
        %v403 = vld [vmem:[%s191 + $0xe8] sm:$0xff]
        %v404 = vld [vmem:[%s191 + $0xf0] sm:$0xff]
        %v405 = vld [vmem:[%s191 + $0xf8] sm:$0xff]
        %v406 = vmul.f32 %v342, %v374
        %v407 = vmul.f32 %v343, %v375
        %v408 = vmul.f32 %v344, %v376
        %v409 = vmul.f32 %v345, %v377
        %v410 = vmul.f32 %v346, %v378
        %v411 = vmul.f32 %v347, %v379
        %v412 = vmul.f32 %v348, %v380
        %v413 = vmul.f32 %v349, %v381
        %v414 = vmul.f32 %v350, %v382
        %v415 = vmul.f32 %v351, %v383
        %v416 = vmul.f32 %v352, %v384
        %v417 = vmul.f32 %v353, %v385
        %v418 = vmul.f32 %v354, %v386
        %v419 = vmul.f32 %v355, %v387
        %v420 = vmul.f32 %v356, %v388
        %v421 = vmul.f32 %v357, %v389
        %v422 = vmul.f32 %v358, %v390
        %v423 = vmul.f32 %v359, %v391
        %v424 = vmul.f32 %v360, %v392
        %v425 = vmul.f32 %v361, %v393
        %v426 = vmul.f32 %v362, %v394
        %v427 = vmul.f32 %v363, %v395
        %v428 = vmul.f32 %v364, %v396
        %v429 = vmul.f32 %v365, %v397
        %v430 = vmul.f32 %v366, %v398
        %v431 = vmul.f32 %v367, %v399
        %v432 = vmul.f32 %v368, %v400
        %v433 = vmul.f32 %v369, %v401
        %v434 = vmul.f32 %v370, %v402
        %v435 = vmul.f32 %v371, %v403
        %v436 = vmul.f32 %v372, %v404
        %v437 = vmul.f32 %v373, %v405
        %v438 = vpack.c.bf16 %v407, %v406
        %v439 = vpack.c.bf16 %v409, %v408
        %v440 = vpack.c.bf16 %v411, %v410
        %v441 = vpack.c.bf16 %v413, %v412
        %v442 = vpack.c.bf16 %v415, %v414
        %v443 = vpack.c.bf16 %v417, %v416
        %v444 = vpack.c.bf16 %v419, %v418
        %v445 = vpack.c.bf16 %v421, %v420
        %v446 = vpack.c.bf16 %v423, %v422
        %v447 = vpack.c.bf16 %v425, %v424
        %v448 = vpack.c.bf16 %v427, %v426
        %v449 = vpack.c.bf16 %v429, %v428
        %v450 = vpack.c.bf16 %v431, %v430
        %v451 = vpack.c.bf16 %v433, %v432
        %v452 = vpack.c.bf16 %v435, %v434
        %v453 = vpack.c.bf16 %v437, %v436
        %v454 = vld [vmem:[#allocation3] sm:$0xff]
        %v455 = vld [vmem:[#allocation3 + $0x8] sm:$0xff]
        %v456 = vld [vmem:[#allocation3 + $0x10] sm:$0xff]
        %v457 = vld [vmem:[#allocation3 + $0x18] sm:$0xff]
        %v458 = vld [vmem:[#allocation3 + $0x20] sm:$0xff]
        %v459 = vld [vmem:[#allocation3 + $0x28] sm:$0xff]
        %v460 = vld [vmem:[#allocation3 + $0x30] sm:$0xff]
        %v461 = vld [vmem:[#allocation3 + $0x38] sm:$0xff]
        %v462 = vld [vmem:[#allocation3 + $0x40] sm:$0xff]
        %v463 = vld [vmem:[#allocation3 + $0x48] sm:$0xff]
        %v464 = vld [vmem:[#allocation3 + $0x50] sm:$0xff]
        %v465 = vld [vmem:[#allocation3 + $0x58] sm:$0xff]
        %v466 = vld [vmem:[#allocation3 + $0x60] sm:$0xff]
        %v467 = vld [vmem:[#allocation3 + $0x68] sm:$0xff]
        %v468 = vld [vmem:[#allocation3 + $0x70] sm:$0xff]
        %v469 = vld [vmem:[#allocation3 + $0x78] sm:$0xff]
        %v470 = vld [vmem:[#allocation3 + $0x80] sm:$0xff]
        %v471 = vld [vmem:[#allocation3 + $0x88] sm:$0xff]
        %v472 = vld [vmem:[#allocation3 + $0x90] sm:$0xff]
        %v473 = vld [vmem:[#allocation3 + $0x98] sm:$0xff]
        %v474 = vld [vmem:[#allocation3 + $0xa0] sm:$0xff]
        %v475 = vld [vmem:[#allocation3 + $0xa8] sm:$0xff]
        %v476 = vld [vmem:[#allocation3 + $0xb0] sm:$0xff]
        %v477 = vld [vmem:[#allocation3 + $0xb8] sm:$0xff]
        %v478 = vld [vmem:[#allocation3 + $0xc0] sm:$0xff]
        %v479 = vld [vmem:[#allocation3 + $0xc8] sm:$0xff]
        %v480 = vld [vmem:[#allocation3 + $0xd0] sm:$0xff]
        %v481 = vld [vmem:[#allocation3 + $0xd8] sm:$0xff]
        %v482 = vld [vmem:[#allocation3 + $0xe0] sm:$0xff]
        %v483 = vld [vmem:[#allocation3 + $0xe8] sm:$0xff]
        %v484 = vld [vmem:[#allocation3 + $0xf0] sm:$0xff]
        %v485 = vld [vmem:[#allocation3 + $0xf8] sm:$0xff]
        %v518 = vunpack.c.l.b16 %v454
        %v519 = vunpack.c.h.b16 %v454
        %v520 = vunpack.c.l.b16 %v455
        %v521 = vunpack.c.h.b16 %v455
        %v522 = vunpack.c.l.b16 %v456
        %v523 = vunpack.c.h.b16 %v456
        %v524 = vunpack.c.l.b16 %v457
        %v525 = vunpack.c.h.b16 %v457
        %v526 = vunpack.c.l.b16 %v458
        %v527 = vunpack.c.h.b16 %v458
        %v528 = vunpack.c.l.b16 %v459
        %v529 = vunpack.c.h.b16 %v459
        %v530 = vunpack.c.l.b16 %v460
        %v531 = vunpack.c.h.b16 %v460
        %v532 = vunpack.c.l.b16 %v461
        %v533 = vunpack.c.h.b16 %v461
        %v534 = vunpack.c.l.b16 %v462
        %v535 = vunpack.c.h.b16 %v462
        %v536 = vunpack.c.l.b16 %v463
        %v537 = vunpack.c.h.b16 %v463
        %v538 = vunpack.c.l.b16 %v464
        %v539 = vunpack.c.h.b16 %v464
        %v540 = vunpack.c.l.b16 %v465
        %v541 = vunpack.c.h.b16 %v465
        %v542 = vunpack.c.l.b16 %v466
        %v543 = vunpack.c.h.b16 %v466
        %v544 = vunpack.c.l.b16 %v467
        %v545 = vunpack.c.h.b16 %v467
        %v546 = vunpack.c.l.b16 %v468
        %v547 = vunpack.c.h.b16 %v468
        %v548 = vunpack.c.l.b16 %v469
        %v549 = vunpack.c.h.b16 %v469
        %v550 = vunpack.c.l.b16 %v470
        %v551 = vunpack.c.h.b16 %v470
        %v552 = vunpack.c.l.b16 %v471
        %v553 = vunpack.c.h.b16 %v471
        %v554 = vunpack.c.l.b16 %v472
        %v555 = vunpack.c.h.b16 %v472
        %v556 = vunpack.c.l.b16 %v473
        %v557 = vunpack.c.h.b16 %v473
        %v558 = vunpack.c.l.b16 %v474
        %v559 = vunpack.c.h.b16 %v474
        %v560 = vunpack.c.l.b16 %v475
        %v561 = vunpack.c.h.b16 %v475
        %v562 = vunpack.c.l.b16 %v476
        %v563 = vunpack.c.h.b16 %v476
        %v564 = vunpack.c.l.b16 %v477
        %v565 = vunpack.c.h.b16 %v477
        %v566 = vunpack.c.l.b16 %v478
        %v567 = vunpack.c.h.b16 %v478
        %v568 = vunpack.c.l.b16 %v479
        %v569 = vunpack.c.h.b16 %v479
        %v570 = vunpack.c.l.b16 %v480
        %v571 = vunpack.c.h.b16 %v480
        %v572 = vunpack.c.l.b16 %v481
        %v573 = vunpack.c.h.b16 %v481
        %v574 = vunpack.c.l.b16 %v482
        %v575 = vunpack.c.h.b16 %v482
        %v576 = vunpack.c.l.b16 %v483
        %v577 = vunpack.c.h.b16 %v483
        %v578 = vunpack.c.l.b16 %v484
        %v579 = vunpack.c.h.b16 %v484
        %v580 = vunpack.c.l.b16 %v485
        %v581 = vunpack.c.h.b16 %v485
        %v582 = vpack.c.b16 %v520, %v518
        %v583 = vpack.c.b16 %v521, %v519
        %v584 = vpack.c.b16 %v524, %v522
        %v585 = vpack.c.b16 %v525, %v523
        %v586 = vpack.c.b16 %v528, %v526
        %v587 = vpack.c.b16 %v529, %v527
        %v588 = vpack.c.b16 %v532, %v530
        %v589 = vpack.c.b16 %v533, %v531
        %v590 = vpack.c.b16 %v536, %v534
        %v591 = vpack.c.b16 %v537, %v535
        %v592 = vpack.c.b16 %v540, %v538
        %v593 = vpack.c.b16 %v541, %v539
        %v594 = vpack.c.b16 %v544, %v542
        %v595 = vpack.c.b16 %v545, %v543
        %v596 = vpack.c.b16 %v548, %v546
        %v597 = vpack.c.b16 %v549, %v547
        %v598 = vpack.c.b16 %v552, %v550
        %v599 = vpack.c.b16 %v553, %v551
        %v600 = vpack.c.b16 %v556, %v554
        %v601 = vpack.c.b16 %v557, %v555
        %v602 = vpack.c.b16 %v560, %v558
        %v603 = vpack.c.b16 %v561, %v559
        %v604 = vpack.c.b16 %v564, %v562
        %v605 = vpack.c.b16 %v565, %v563
        %v606 = vpack.c.b16 %v568, %v566
        %v607 = vpack.c.b16 %v569, %v567
        %v608 = vpack.c.b16 %v572, %v570
        %v609 = vpack.c.b16 %v573, %v571
        %v610 = vpack.c.b16 %v576, %v574
        %v611 = vpack.c.b16 %v577, %v575
        %v612 = vpack.c.b16 %v580, %v578
        %v613 = vpack.c.b16 %v581, %v579
        %646 = vmatpush.bf16.msra.mxu0 %v445
        %647 = vmatpush.bf16.msra.mxu0 %v444
        %648 = vmatpush.bf16.msra.mxu0 %v443
        %649 = vmatpush.bf16.msra.mxu0 %v442
        %650 = vmatpush.bf16.msra.mxu0 %v441
        %651 = vmatpush.bf16.msra.mxu0 %v440
        %652 = vmatpush.bf16.msra.mxu0 %v439
        %653 = vmatpush.bf16.msra.mxu0 %v438
        %654 = vmatmul.bf16.gmra.mxu0 %v582
        %v655 = vpop.f32.mrf.mxu0
        %v656 = vadd.f32 0.0, %v655
        %v657 = vpop.f32.mrf.mxu0
        %v658 = vadd.f32 0.0, %v657
        %659 = vmatmul.bf16.gmra.mxu0 %v584
        %v660 = vpop.f32.mrf.mxu0
        %v661 = vadd.f32 0.0, %v660
        %v662 = vpop.f32.mrf.mxu0
        %v663 = vadd.f32 0.0, %v662
        %664 = vmatmul.bf16.gmra.mxu0 %v586
        %v665 = vpop.f32.mrf.mxu0
        %v666 = vadd.f32 0.0, %v665
        %v667 = vpop.f32.mrf.mxu0
        %v668 = vadd.f32 0.0, %v667
        %669 = vmatmul.bf16.gmra.mxu0 %v588
        %v670 = vpop.f32.mrf.mxu0
        %v671 = vadd.f32 0.0, %v670
        %v672 = vpop.f32.mrf.mxu0
        %v673 = vadd.f32 0.0, %v672
        %674 = vmatmul.bf16.gmra.mxu0 %v590
        %v675 = vpop.f32.mrf.mxu0
        %v676 = vadd.f32 0.0, %v675
        %v677 = vpop.f32.mrf.mxu0
        %v678 = vadd.f32 0.0, %v677
        %679 = vmatmul.bf16.gmra.mxu0 %v592
        %v680 = vpop.f32.mrf.mxu0
        %v681 = vadd.f32 0.0, %v680
        %v682 = vpop.f32.mrf.mxu0
        %v683 = vadd.f32 0.0, %v682
        %684 = vmatmul.bf16.gmra.mxu0 %v594
        %v685 = vpop.f32.mrf.mxu0
        %v686 = vadd.f32 0.0, %v685
        %v687 = vpop.f32.mrf.mxu0
        %v688 = vadd.f32 0.0, %v687
        %689 = vmatmul.bf16.gmra.mxu0 %v596
        %v690 = vpop.f32.mrf.mxu0
        %v691 = vadd.f32 0.0, %v690
        %v692 = vpop.f32.mrf.mxu0
        %v693 = vadd.f32 0.0, %v692
        %694 = vmatmul.bf16.gmra.mxu0 %v598
        %v695 = vpop.f32.mrf.mxu0
        %v696 = vadd.f32 0.0, %v695
        %v697 = vpop.f32.mrf.mxu0
        %v698 = vadd.f32 0.0, %v697
        %699 = vmatmul.bf16.gmra.mxu0 %v600
        %v700 = vpop.f32.mrf.mxu0
        %v701 = vadd.f32 0.0, %v700
        %v702 = vpop.f32.mrf.mxu0
        %v703 = vadd.f32 0.0, %v702
        %704 = vmatmul.bf16.gmra.mxu0 %v602
        %v705 = vpop.f32.mrf.mxu0
        %v706 = vadd.f32 0.0, %v705
        %v707 = vpop.f32.mrf.mxu0
        %v708 = vadd.f32 0.0, %v707
        %709 = vmatmul.bf16.gmra.mxu0 %v604
        %v710 = vpop.f32.mrf.mxu0
        %v711 = vadd.f32 0.0, %v710
        %v712 = vpop.f32.mrf.mxu0
        %v713 = vadd.f32 0.0, %v712
        %714 = vmatmul.bf16.gmra.mxu0 %v606
        %v715 = vpop.f32.mrf.mxu0
        %v716 = vadd.f32 0.0, %v715
        %v717 = vpop.f32.mrf.mxu0
        %v718 = vadd.f32 0.0, %v717
        %719 = vmatmul.bf16.gmra.mxu0 %v608
        %v720 = vpop.f32.mrf.mxu0
        %v721 = vadd.f32 0.0, %v720
        %v722 = vpop.f32.mrf.mxu0
        %v723 = vadd.f32 0.0, %v722
        %724 = vmatmul.bf16.gmra.mxu0 %v610
        %v725 = vpop.f32.mrf.mxu0
        %v726 = vadd.f32 0.0, %v725
        %v727 = vpop.f32.mrf.mxu0
        %v728 = vadd.f32 0.0, %v727
        %729 = vmatmul.bf16.gmra.mxu0 %v612
        %v730 = vpop.f32.mrf.mxu0
        %v731 = vadd.f32 0.0, %v730
        %v732 = vpop.f32.mrf.mxu0
        %v733 = vadd.f32 0.0, %v732
        %734 = vdwg.mxu0
        %735 = vmatpush.bf16.msra.mxu0 %v453
        %736 = vmatpush.bf16.msra.mxu0 %v452
        %737 = vmatpush.bf16.msra.mxu0 %v451
        %738 = vmatpush.bf16.msra.mxu0 %v450
        %739 = vmatpush.bf16.msra.mxu0 %v449
        %740 = vmatpush.bf16.msra.mxu0 %v448
        %741 = vmatpush.bf16.msra.mxu0 %v447
        %742 = vmatpush.bf16.msra.mxu0 %v446
        %743 = vmatmul.bf16.gmra.mxu0 %v583
        %v744 = vpop.f32.mrf.mxu0
        %v745 = vadd.f32 %v656, %v744
        %v746 = vpop.f32.mrf.mxu0
        %v747 = vadd.f32 %v658, %v746
        %748 = vmatmul.bf16.gmra.mxu0 %v585
        %v749 = vpop.f32.mrf.mxu0
        %v750 = vadd.f32 %v661, %v749
        %v751 = vpop.f32.mrf.mxu0
        %v752 = vadd.f32 %v663, %v751
        %753 = vmatmul.bf16.gmra.mxu0 %v587
        %v754 = vpop.f32.mrf.mxu0
        %v755 = vadd.f32 %v666, %v754
        %v756 = vpop.f32.mrf.mxu0
        %v757 = vadd.f32 %v668, %v756
        %758 = vmatmul.bf16.gmra.mxu0 %v589
        %v759 = vpop.f32.mrf.mxu0
        %v760 = vadd.f32 %v671, %v759
        %v761 = vpop.f32.mrf.mxu0
        %v762 = vadd.f32 %v673, %v761
        %763 = vmatmul.bf16.gmra.mxu0 %v591
        %v764 = vpop.f32.mrf.mxu0
        %v765 = vadd.f32 %v676, %v764
        %v766 = vpop.f32.mrf.mxu0
        %v767 = vadd.f32 %v678, %v766
        %768 = vmatmul.bf16.gmra.mxu0 %v593
        %v769 = vpop.f32.mrf.mxu0
        %v770 = vadd.f32 %v681, %v769
        %v771 = vpop.f32.mrf.mxu0
        %v772 = vadd.f32 %v683, %v771
        %773 = vmatmul.bf16.gmra.mxu0 %v595
        %v774 = vpop.f32.mrf.mxu0
        %v775 = vadd.f32 %v686, %v774
        %v776 = vpop.f32.mrf.mxu0
        %v777 = vadd.f32 %v688, %v776
        %778 = vmatmul.bf16.gmra.mxu0 %v597
        %v779 = vpop.f32.mrf.mxu0
        %v780 = vadd.f32 %v691, %v779
        %v781 = vpop.f32.mrf.mxu0
        %v782 = vadd.f32 %v693, %v781
        %783 = vmatmul.bf16.gmra.mxu0 %v599
        %v784 = vpop.f32.mrf.mxu0
        %v785 = vadd.f32 %v696, %v784
        %v786 = vpop.f32.mrf.mxu0
        %v787 = vadd.f32 %v698, %v786
        %788 = vmatmul.bf16.gmra.mxu0 %v601
        %v789 = vpop.f32.mrf.mxu0
        %v790 = vadd.f32 %v701, %v789
        %v791 = vpop.f32.mrf.mxu0
        %v792 = vadd.f32 %v703, %v791
        %793 = vmatmul.bf16.gmra.mxu0 %v603
        %v794 = vpop.f32.mrf.mxu0
        %v795 = vadd.f32 %v706, %v794
        %v796 = vpop.f32.mrf.mxu0
        %v797 = vadd.f32 %v708, %v796
        %798 = vmatmul.bf16.gmra.mxu0 %v605
        %v799 = vpop.f32.mrf.mxu0
        %v800 = vadd.f32 %v711, %v799
        %v801 = vpop.f32.mrf.mxu0
        %v802 = vadd.f32 %v713, %v801
        %803 = vmatmul.bf16.gmra.mxu0 %v607
        %v804 = vpop.f32.mrf.mxu0
        %v805 = vadd.f32 %v716, %v804
        %v806 = vpop.f32.mrf.mxu0
        %v807 = vadd.f32 %v718, %v806
        %808 = vmatmul.bf16.gmra.mxu0 %v609
        %v809 = vpop.f32.mrf.mxu0
        %v810 = vadd.f32 %v721, %v809
        %v811 = vpop.f32.mrf.mxu0
        %v812 = vadd.f32 %v723, %v811
        %813 = vmatmul.bf16.gmra.mxu0 %v611
        %v814 = vpop.f32.mrf.mxu0
        %v815 = vadd.f32 %v726, %v814
        %v816 = vpop.f32.mrf.mxu0
        %v817 = vadd.f32 %v728, %v816
        %818 = vmatmul.bf16.gmra.mxu0 %v613
        %v819 = vpop.f32.mrf.mxu0
        %v820 = vadd.f32 %v731, %v819
        %v821 = vpop.f32.mrf.mxu0
        %v822 = vadd.f32 %v733, %v821
        %823 = vdwg.mxu0
        %824 = vst [vmem:[#allocation2] sm:$0xff] %v745
        %825 = vst [vmem:[#allocation2 + $0x8] sm:$0xff] %v747
        %826 = vst [vmem:[#allocation2 + $0x10] sm:$0xff] %v750
        %827 = vst [vmem:[#allocation2 + $0x18] sm:$0xff] %v752
        %828 = vst [vmem:[#allocation2 + $0x20] sm:$0xff] %v755
        %829 = vst [vmem:[#allocation2 + $0x28] sm:$0xff] %v757
        %830 = vst [vmem:[#allocation2 + $0x30] sm:$0xff] %v760
        %831 = vst [vmem:[#allocation2 + $0x38] sm:$0xff] %v762
        %832 = vst [vmem:[#allocation2 + $0x40] sm:$0xff] %v765
        %833 = vst [vmem:[#allocation2 + $0x48] sm:$0xff] %v767
        %834 = vst [vmem:[#allocation2 + $0x50] sm:$0xff] %v770
        %835 = vst [vmem:[#allocation2 + $0x58] sm:$0xff] %v772
        %836 = vst [vmem:[#allocation2 + $0x60] sm:$0xff] %v775
        %837 = vst [vmem:[#allocation2 + $0x68] sm:$0xff] %v777
        %838 = vst [vmem:[#allocation2 + $0x70] sm:$0xff] %v780
        %839 = vst [vmem:[#allocation2 + $0x78] sm:$0xff] %v782
        %840 = vst [vmem:[#allocation2 + $0x80] sm:$0xff] %v785
        %841 = vst [vmem:[#allocation2 + $0x88] sm:$0xff] %v787
        %842 = vst [vmem:[#allocation2 + $0x90] sm:$0xff] %v790
        %843 = vst [vmem:[#allocation2 + $0x98] sm:$0xff] %v792
        %844 = vst [vmem:[#allocation2 + $0xa0] sm:$0xff] %v795
        %845 = vst [vmem:[#allocation2 + $0xa8] sm:$0xff] %v797
        %846 = vst [vmem:[#allocation2 + $0xb0] sm:$0xff] %v800
        %847 = vst [vmem:[#allocation2 + $0xb8] sm:$0xff] %v802
        %848 = vst [vmem:[#allocation2 + $0xc0] sm:$0xff] %v805
        %849 = vst [vmem:[#allocation2 + $0xc8] sm:$0xff] %v807
        %850 = vst [vmem:[#allocation2 + $0xd0] sm:$0xff] %v810
        %851 = vst [vmem:[#allocation2 + $0xd8] sm:$0xff] %v812
        %852 = vst [vmem:[#allocation2 + $0xe0] sm:$0xff] %v815
        %853 = vst [vmem:[#allocation2 + $0xe8] sm:$0xff] %v817
        %854 = vst [vmem:[#allocation2 + $0xf0] sm:$0xff] %v820
        %855 = vst [vmem:[#allocation2 + $0xf8] sm:$0xff] %v822
        %v856 = vld [vmem:[#allocation9] sm:$0xff]
        %v857 = vld [vmem:[#allocation9 + $0x8] sm:$0xff]
        %v858 = vld [vmem:[#allocation9 + $0x10] sm:$0xff]
        %v859 = vld [vmem:[#allocation9 + $0x18] sm:$0xff]
        %v860 = vld [vmem:[#allocation9 + $0x20] sm:$0xff]
        %v861 = vld [vmem:[#allocation9 + $0x28] sm:$0xff]
        %v862 = vld [vmem:[#allocation9 + $0x30] sm:$0xff]
        %v863 = vld [vmem:[#allocation9 + $0x38] sm:$0xff]
        %v864 = vld [vmem:[#allocation9 + $0x40] sm:$0xff]
        %v865 = vld [vmem:[#allocation9 + $0x48] sm:$0xff]
        %v866 = vld [vmem:[#allocation9 + $0x50] sm:$0xff]
        %v867 = vld [vmem:[#allocation9 + $0x58] sm:$0xff]
        %v868 = vld [vmem:[#allocation9 + $0x60] sm:$0xff]
        %v869 = vld [vmem:[#allocation9 + $0x68] sm:$0xff]
        %v870 = vld [vmem:[#allocation9 + $0x70] sm:$0xff]
        %v871 = vld [vmem:[#allocation9 + $0x78] sm:$0xff]
        %v872 = vld [vmem:[#allocation9 + $0x80] sm:$0xff]
        %v873 = vld [vmem:[#allocation9 + $0x88] sm:$0xff]
        %v874 = vld [vmem:[#allocation9 + $0x90] sm:$0xff]
        %v875 = vld [vmem:[#allocation9 + $0x98] sm:$0xff]
        %v876 = vld [vmem:[#allocation9 + $0xa0] sm:$0xff]
        %v877 = vld [vmem:[#allocation9 + $0xa8] sm:$0xff]
        %v878 = vld [vmem:[#allocation9 + $0xb0] sm:$0xff]
        %v879 = vld [vmem:[#allocation9 + $0xb8] sm:$0xff]
        %v880 = vld [vmem:[#allocation9 + $0xc0] sm:$0xff]
        %v881 = vld [vmem:[#allocation9 + $0xc8] sm:$0xff]
        %v882 = vld [vmem:[#allocation9 + $0xd0] sm:$0xff]
        %v883 = vld [vmem:[#allocation9 + $0xd8] sm:$0xff]
        %v884 = vld [vmem:[#allocation9 + $0xe0] sm:$0xff]
        %v885 = vld [vmem:[#allocation9 + $0xe8] sm:$0xff]
        %v886 = vld [vmem:[#allocation9 + $0xf0] sm:$0xff]
        %v887 = vld [vmem:[#allocation9 + $0xf8] sm:$0xff]
        %v888 = vadd.f32 %v856, %v745
        %v889 = vadd.f32 %v857, %v747
        %v890 = vadd.f32 %v858, %v750
        %v891 = vadd.f32 %v859, %v752
        %v892 = vadd.f32 %v860, %v755
        %v893 = vadd.f32 %v861, %v757
        %v894 = vadd.f32 %v862, %v760
        %v895 = vadd.f32 %v863, %v762
        %v896 = vadd.f32 %v864, %v765
        %v897 = vadd.f32 %v865, %v767
        %v898 = vadd.f32 %v866, %v770
        %v899 = vadd.f32 %v867, %v772
        %v900 = vadd.f32 %v868, %v775
        %v901 = vadd.f32 %v869, %v777
        %v902 = vadd.f32 %v870, %v780
        %v903 = vadd.f32 %v871, %v782
        %v904 = vadd.f32 %v872, %v785
        %v905 = vadd.f32 %v873, %v787
        %v906 = vadd.f32 %v874, %v790
        %v907 = vadd.f32 %v875, %v792
        %v908 = vadd.f32 %v876, %v795
        %v909 = vadd.f32 %v877, %v797
        %v910 = vadd.f32 %v878, %v800
        %v911 = vadd.f32 %v879, %v802
        %v912 = vadd.f32 %v880, %v805
        %v913 = vadd.f32 %v881, %v807
        %v914 = vadd.f32 %v882, %v810
        %v915 = vadd.f32 %v883, %v812
        %v916 = vadd.f32 %v884, %v815
        %v917 = vadd.f32 %v885, %v817
        %v918 = vadd.f32 %v886, %v820
        %v919 = vadd.f32 %v887, %v822
        %920 = vst [vmem:[#allocation9] sm:$0xff] %v888
        %921 = vst [vmem:[#allocation9 + $0x8] sm:$0xff] %v889
        %922 = vst [vmem:[#allocation9 + $0x10] sm:$0xff] %v890
        %923 = vst [vmem:[#allocation9 + $0x18] sm:$0xff] %v891
        %924 = vst [vmem:[#allocation9 + $0x20] sm:$0xff] %v892
        %925 = vst [vmem:[#allocation9 + $0x28] sm:$0xff] %v893
        %926 = vst [vmem:[#allocation9 + $0x30] sm:$0xff] %v894
        %927 = vst [vmem:[#allocation9 + $0x38] sm:$0xff] %v895
        %928 = vst [vmem:[#allocation9 + $0x40] sm:$0xff] %v896
        %929 = vst [vmem:[#allocation9 + $0x48] sm:$0xff] %v897
        %930 = vst [vmem:[#allocation9 + $0x50] sm:$0xff] %v898
        %931 = vst [vmem:[#allocation9 + $0x58] sm:$0xff] %v899
        %932 = vst [vmem:[#allocation9 + $0x60] sm:$0xff] %v900
        %933 = vst [vmem:[#allocation9 + $0x68] sm:$0xff] %v901
        %934 = vst [vmem:[#allocation9 + $0x70] sm:$0xff] %v902
        %935 = vst [vmem:[#allocation9 + $0x78] sm:$0xff] %v903
        %936 = vst [vmem:[#allocation9 + $0x80] sm:$0xff] %v904
        %937 = vst [vmem:[#allocation9 + $0x88] sm:$0xff] %v905
        %938 = vst [vmem:[#allocation9 + $0x90] sm:$0xff] %v906
        %939 = vst [vmem:[#allocation9 + $0x98] sm:$0xff] %v907
        %940 = vst [vmem:[#allocation9 + $0xa0] sm:$0xff] %v908
        %941 = vst [vmem:[#allocation9 + $0xa8] sm:$0xff] %v909
        %942 = vst [vmem:[#allocation9 + $0xb0] sm:$0xff] %v910
        %943 = vst [vmem:[#allocation9 + $0xb8] sm:$0xff] %v911
        %944 = vst [vmem:[#allocation9 + $0xc0] sm:$0xff] %v912
        %945 = vst [vmem:[#allocation9 + $0xc8] sm:$0xff] %v913
        %946 = vst [vmem:[#allocation9 + $0xd0] sm:$0xff] %v914
        %947 = vst [vmem:[#allocation9 + $0xd8] sm:$0xff] %v915
        %948 = vst [vmem:[#allocation9 + $0xe0] sm:$0xff] %v916
        %949 = vst [vmem:[#allocation9 + $0xe8] sm:$0xff] %v917
        %950 = vst [vmem:[#allocation9 + $0xf0] sm:$0xff] %v918
        %951 = vst [vmem:[#allocation9 + $0xf8] sm:$0xff] %v919
        %p952 = scmp.eq.s32.totalorder %s17, 2
        // Predicated region
        $region49: #{tpu_custom_call.1} parent=31 // pred_check
          %p953 = pneg %p952
        $region50: #{tpu_custom_call.1} parent=31 // pred_check_branch
          %955 = sbr.rel (%p953) target = $region52
        $region51: #{tpu_custom_call.1} parent=31 // pred_region
          %v956 = vld [vmem:[#allocation9] sm:$0xff]
          %v957 = vld [vmem:[#allocation9 + $0x8] sm:$0xff]
          %v958 = vld [vmem:[#allocation9 + $0x10] sm:$0xff]
          %v959 = vld [vmem:[#allocation9 + $0x18] sm:$0xff]
          %v960 = vld [vmem:[#allocation9 + $0x20] sm:$0xff]
          %v961 = vld [vmem:[#allocation9 + $0x28] sm:$0xff]
          %v962 = vld [vmem:[#allocation9 + $0x30] sm:$0xff]
          %v963 = vld [vmem:[#allocation9 + $0x38] sm:$0xff]
          %v964 = vld [vmem:[#allocation9 + $0x40] sm:$0xff]
          %v965 = vld [vmem:[#allocation9 + $0x48] sm:$0xff]
          %v966 = vld [vmem:[#allocation9 + $0x50] sm:$0xff]
          %v967 = vld [vmem:[#allocation9 + $0x58] sm:$0xff]
          %v968 = vld [vmem:[#allocation9 + $0x60] sm:$0xff]
          %v969 = vld [vmem:[#allocation9 + $0x68] sm:$0xff]
          %v970 = vld [vmem:[#allocation9 + $0x70] sm:$0xff]
          %v971 = vld [vmem:[#allocation9 + $0x78] sm:$0xff]
          %v972 = vld [vmem:[#allocation9 + $0x80] sm:$0xff]
          %v973 = vld [vmem:[#allocation9 + $0x88] sm:$0xff]
          %v974 = vld [vmem:[#allocation9 + $0x90] sm:$0xff]
          %v975 = vld [vmem:[#allocation9 + $0x98] sm:$0xff]
          %v976 = vld [vmem:[#allocation9 + $0xa0] sm:$0xff]
          %v977 = vld [vmem:[#allocation9 + $0xa8] sm:$0xff]
          %v978 = vld [vmem:[#allocation9 + $0xb0] sm:$0xff]
          %v979 = vld [vmem:[#allocation9 + $0xb8] sm:$0xff]
          %v980 = vld [vmem:[#allocation9 + $0xc0] sm:$0xff]
          %v981 = vld [vmem:[#allocation9 + $0xc8] sm:$0xff]
          %v982 = vld [vmem:[#allocation9 + $0xd0] sm:$0xff]
          %v983 = vld [vmem:[#allocation9 + $0xd8] sm:$0xff]
          %v984 = vld [vmem:[#allocation9 + $0xe0] sm:$0xff]
          %v985 = vld [vmem:[#allocation9 + $0xe8] sm:$0xff]
          %v986 = vld [vmem:[#allocation9 + $0xf0] sm:$0xff]
          %v987 = vld [vmem:[#allocation9 + $0xf8] sm:$0xff]
          %v988 = vmul.f32 %v956, 0.25
          %v989 = vmul.f32 %v957, 0.25
          %v990 = vmul.f32 %v958, 0.25
          %v991 = vmul.f32 %v959, 0.25
          %v992 = vmul.f32 %v960, 0.25
          %v993 = vmul.f32 %v961, 0.25
          %v994 = vmul.f32 %v962, 0.25
          %v995 = vmul.f32 %v963, 0.25
          %v996 = vmul.f32 %v964, 0.25
          %v997 = vmul.f32 %v965, 0.25
          %v998 = vmul.f32 %v966, 0.25
          %v999 = vmul.f32 %v967, 0.25
          %v1000 = vmul.f32 %v968, 0.25
          %v1001 = vmul.f32 %v969, 0.25
          %v1002 = vmul.f32 %v970, 0.25
          %v1003 = vmul.f32 %v971, 0.25
          %v1004 = vmul.f32 %v972, 0.25
          %v1005 = vmul.f32 %v973, 0.25
          %v1006 = vmul.f32 %v974, 0.25
          %v1007 = vmul.f32 %v975, 0.25
          %v1008 = vmul.f32 %v976, 0.25
          %v1009 = vmul.f32 %v977, 0.25
          %v1010 = vmul.f32 %v978, 0.25
          %v1011 = vmul.f32 %v979, 0.25
          %v1012 = vmul.f32 %v980, 0.25
          %v1013 = vmul.f32 %v981, 0.25
          %v1014 = vmul.f32 %v982, 0.25
          %v1015 = vmul.f32 %v983, 0.25
          %v1016 = vmul.f32 %v984, 0.25
          %v1017 = vmul.f32 %v985, 0.25
          %v1018 = vmul.f32 %v986, 0.25
          %v1019 = vmul.f32 %v987, 0.25
          %1020 = vst [vmem:[#allocation9] sm:$0xff] %v988
          %1021 = vst [vmem:[#allocation9 + $0x8] sm:$0xff] %v989
          %1022 = vst [vmem:[#allocation9 + $0x10] sm:$0xff] %v990
          %1023 = vst [vmem:[#allocation9 + $0x18] sm:$0xff] %v991
          %1024 = vst [vmem:[#allocation9 + $0x20] sm:$0xff] %v992
          %1025 = vst [vmem:[#allocation9 + $0x28] sm:$0xff] %v993
          %1026 = vst [vmem:[#allocation9 + $0x30] sm:$0xff] %v994
          %1027 = vst [vmem:[#allocation9 + $0x38] sm:$0xff] %v995
          %1028 = vst [vmem:[#allocation9 + $0x40] sm:$0xff] %v996
          %1029 = vst [vmem:[#allocation9 + $0x48] sm:$0xff] %v997
          %1030 = vst [vmem:[#allocation9 + $0x50] sm:$0xff] %v998
          %1031 = vst [vmem:[#allocation9 + $0x58] sm:$0xff] %v999
          %1032 = vst [vmem:[#allocation9 + $0x60] sm:$0xff] %v1000
          %1033 = vst [vmem:[#allocation9 + $0x68] sm:$0xff] %v1001
          %1034 = vst [vmem:[#allocation9 + $0x70] sm:$0xff] %v1002
          %1035 = vst [vmem:[#allocation9 + $0x78] sm:$0xff] %v1003
          %1036 = vst [vmem:[#allocation9 + $0x80] sm:$0xff] %v1004
          %1037 = vst [vmem:[#allocation9 + $0x88] sm:$0xff] %v1005
          %1038 = vst [vmem:[#allocation9 + $0x90] sm:$0xff] %v1006
          %1039 = vst [vmem:[#allocation9 + $0x98] sm:$0xff] %v1007
          %1040 = vst [vmem:[#allocation9 + $0xa0] sm:$0xff] %v1008
          %1041 = vst [vmem:[#allocation9 + $0xa8] sm:$0xff] %v1009
          %1042 = vst [vmem:[#allocation9 + $0xb0] sm:$0xff] %v1010
          %1043 = vst [vmem:[#allocation9 + $0xb8] sm:$0xff] %v1011
          %1044 = vst [vmem:[#allocation9 + $0xc0] sm:$0xff] %v1012
          %1045 = vst [vmem:[#allocation9 + $0xc8] sm:$0xff] %v1013
          %1046 = vst [vmem:[#allocation9 + $0xd0] sm:$0xff] %v1014
          %1047 = vst [vmem:[#allocation9 + $0xd8] sm:$0xff] %v1015
          %1048 = vst [vmem:[#allocation9 + $0xe0] sm:$0xff] %v1016
          %1049 = vst [vmem:[#allocation9 + $0xe8] sm:$0xff] %v1017
          %1050 = vst [vmem:[#allocation9 + $0xf0] sm:$0xff] %v1018
          %1051 = vst [vmem:[#allocation9 + $0xf8] sm:$0xff] %v1019
        $region52: #{tpu_custom_call.1} parent=31 // pred_fallthru
          _
        // Predicated region
        $region53: #{tpu_custom_call.1} parent=31 // pred_check
          %p1052 = pneg %p98
        $region54: #{tpu_custom_call.1} parent=31 // pred_check_branch
          %1054 = sbr.rel (%p1052) target = $region56
        $region55: #{tpu_custom_call.1} parent=31 // pred_region
          %1056 = vsyncadd [#allocation5], 0
          %s1057 = sshll.u32 [#allocation9], 4
          %s1058 = int_to_ptr.vmem [resolvable:$true] %s1057
          %s1059 = sshll.u32 %s3, 4
          %s1060 = int_to_ptr.hbm [resolvable:$true] %s1059
          %1065 = dma.vmem_to_hbm [thread:$0]  %s1058, 4096, %s1060, [#allocation5], 128, 128, 8
        $region56: #{tpu_custom_call.1} parent=31 // pred_fallthru
          _
        // Predicated region
        $region57: #{tpu_custom_call.1} parent=31 // pred_check
          %p1066 = pneg %p98
        $region58: #{tpu_custom_call.1} parent=31 // pred_check_branch
          %1068 = sbr.rel (%p1066) target = $region60
        $region59: #{tpu_custom_call.1} parent=31 // pred_region
          %1070 = dma.done [#allocation5], 4096
        $region60: #{tpu_custom_call.1} parent=31 // pred_fallthru
          _
      $region32: #{tpu_custom_call.1} parent=5 // pred_fallthru
        _
      %p1071 = scmp.le.s32.totalorder 2, %s12
      // Predicated region
      $region61: #{tpu_custom_call.1} parent=5 // pred_check
        %p1072 = pneg %p1071
      $region62: #{tpu_custom_call.1} parent=5 // pred_check_branch
        %1074 = sbr.rel (%p1072) target = $region64
      $region63: #{tpu_custom_call.1} parent=5 // pred_region
        %s1075 = ssub.s32 %s12, 2
      $region64: #{tpu_custom_call.1} parent=5 // pred_fallthru
        _
    $region6: #{tpu_custom_call.1} parent=1 // loop_footer
      %s16 = sadd.s32 1, %s12
    $region7: #{tpu_custom_call.1} parent=1 // loop_footer_branch
      %11 = sbr.rel target = $region3
    $region8: #{tpu_custom_call.1} parent=1 // loop_exit
      _
    %1076 = vsyncpa [#allocation4], 1
    %s1077 = scalar_lea.sflag [#allocation4], 1
    %1078 = vsyncpa %s1077, 1
    %1079 = vsyncpa [#allocation7], 1
    %1080 = vsyncpa [#allocation5], 1
    %s1081 = scalar_lea.sflag [#allocation5], 1
    %1082 = vsyncpa %s1081, 1

</llo_original>
